<compile_context>
chip_gen: v6e
topology: v6e:2x2x1
jax: 0.10.0
libtpu: 0.0.40
codegen_flags: <defaults>
</compile_context>

<pallas_src>
import functools

import numpy as np

import jax
import jax.numpy as jnp
from jax.experimental import pallas as pl
from jax.experimental.pallas import tpu as pltpu


def _sigmoid(x, approx):
    if approx:
        # keep the reciprocal on the EUP (approx vrcp) instead of a VALU divide
        return pl.reciprocal(1.0 + jnp.exp(-x), approx=True)
    return jax.nn.sigmoid(x)


def _silu(x, approx):
    return x * _sigmoid(x, approx)


def _mbconv_kernel(x_ref, rowcol_ref,
                   w_exp_ref, bn1b_ref,
                   dw_ref, bn2b_ref,
                   se_w1_ref, se_w2_ref,
                   w_proj_ref, bn3b_ref,
                   out_ref,
                   *, H, W, HW, use_residual, ew_dtype, approx):
    Bt = x_ref.shape[0]
    HWp = x_ref.shape[2]
    mm_dt = w_exp_ref.dtype                       # matmul operand dtype (f32 / bf16)
    padded = HWp != HW

    # ---- 3x3 neighbor-validity masks, built in-kernel (no (9,HW) f32 DMA) ----
    ii = rowcol_ref[0:1, :]                       # (1, HWp) int32 row idx (H on pad lanes)
    jj = rowcol_ref[1:2, :]                       # (1, HWp) int32 col idx (W on pad lanes)
    out_ok = (ii < H) & (jj < W)                  # this output lane is a real pixel
    masks = []
    for di in (-1, 0, 1):
        for dj in (-1, 0, 1):
            ok = (out_ok & (ii + di >= 0) & (ii + di < H)
                  & (jj + dj >= 0) & (jj + dj < W))
            masks.append(ok.astype(jnp.float32).astype(ew_dtype))
    lane_valid = out_ok.astype(jnp.float32) if padded else None

    # ---- batch-packed: Bt images per grid step (amortizes per-step overhead) ----
    for b in range(Bt):
        x = x_ref[b]                              # (C1, HWp) f32

        # expand: 1x1 conv (BN scale folded into weights) + bias + SiLU
        h = jnp.dot(w_exp_ref[...], x.astype(mm_dt),
                    preferred_element_type=jnp.float32)      # (Cexp, HWp) f32
        h = _silu(h + bn1b_ref[...], approx)
        hb = h.astype(ew_dtype)                   # bf16 on v6e/v7x halves VALU work

        # depthwise 3x3 (stride 1, zero pad 1), BN scale folded into taps.
        # Center tap (k=4) initializes the accumulator: no roll, no mask.
        acc = hb * dw_ref[:, 4:5]
        k = 0
        for di in (-1, 0, 1):
            for dj in (-1, 0, 1):
                if di == 0 and dj == 0:
                    k += 1
                    continue
                shift = di * W + dj               # flattened spatial offset
                # shifted[c, r] = hb[c, r + shift]; wrapped / pad entries are masked.
                shifted = pltpu.roll(hb, shift=(-shift) % HWp, axis=1)
                acc = acc + (shifted * dw_ref[:, k:k + 1]) * masks[k]
                k += 1
        g = _silu(acc.astype(jnp.float32) + bn2b_ref[...], approx)   # (Cexp, HWp) f32

        # squeeze-excitation (VPU broadcast-mul + reduce, no tiny MXU dots)
        gp = g * lane_valid if padded else g
        pooled = jnp.sum(gp, axis=1, keepdims=True) * (1.0 / HW)        # (Cexp, 1)
        s1 = jnp.sum(pooled * se_w1_ref[...], axis=0, keepdims=True)    # (1, se_c)
        s1 = _silu(s1, approx)
        s = jnp.sum(se_w2_ref[...] * s1, axis=1, keepdims=True)         # (Cexp, 1)
        s = _sigmoid(s, approx)
        g = g * s

        # project: 1x1 conv (BN scale folded) + bias (no activation)
        o = jnp.dot(w_proj_ref[...], g.astype(mm_dt),
                    preferred_element_type=jnp.float32)       # (C2, HWp) f32
        o = o + bn3b_ref[...]
        if use_residual:
            o = o + x                             # Dropout2d == identity (inference)
        out_ref[b] = o


def fold_params(p, matmul_dtype=jnp.float32, ew_dtype=jnp.float32):
    """Fold BN scales into conv weights; lay params out for the (C, HW) kernel."""
    cexp = p['w_exp'].shape[1]
    c2 = p['w_proj'].shape[1]
    return dict(
        w_exp_t=(p['w_exp'] * p['bn1s']).T.astype(matmul_dtype),    # (Cexp, C1)
        bn1b=p['bn1b'].reshape(cexp, 1),
        dw_t=(p['dw'] * p['bn2s']).T.astype(ew_dtype),               # (Cexp, 9)
        bn2b=p['bn2b'].reshape(cexp, 1),
        se_w1=p['se_w1'],                                            # (Cexp, se_c)
        se_w2=p['se_w2'].T,                                          # (Cexp, se_c)
        w_proj_t=(p['w_proj'] * p['bn3s']).T.astype(matmul_dtype),   # (C2, Cexp)
        bn3b=p['bn3b'].reshape(c2, 1),
    )


def mbconv_pallas(x_nchw, p, *, use_residual, matmul_dtype=jnp.float32,
                  ew_dtype=jnp.float32, approx=False, batch_tile=8):
    N, C1, H, W = x_nchw.shape
    HW = H * W
    HWp = ((HW + 127) // 128) * 128               # lane-dense last dim
    C2 = p['w_proj'].shape[1]
    Cexp = p['w_exp'].shape[1]

    x = x_nchw.reshape(N, C1, HW)                 # free reshape: NCHW kept as-is
    if HWp != HW:
        x = jnp.pad(x, ((0, 0), (0, 0), (0, HWp - HW)))

    # per-lane (row, col) indices; pad lanes set out of range so every mask is 0 there
    ii = np.concatenate([np.repeat(np.arange(H), W), np.full(HWp - HW, H)])
    jj = np.concatenate([np.tile(np.arange(W), H), np.full(HWp - HW, W)])
    rowcol = jnp.asarray(np.stack([ii, jj]).astype(np.int32))       # (2, HWp)

    kp = fold_params(p, matmul_dtype, ew_dtype)

    # ---- pick the batch-pack factor Bt under a conservative VMEM budget ----
    ew_b = jnp.dtype(ew_dtype).itemsize
    mm_b = jnp.dtype(matmul_dtype).itemsize

    def vmem_est(bt):
        io = 2 * bt * (C1 + C2) * HWp * 4                      # double-buffered x/out
        interm = Cexp * HWp * (3 * 4 + 3 * ew_b)               # h/g/o f32 + hb/acc/shift
        wts = (Cexp * C1 + C2 * Cexp) * mm_b + 9 * Cexp * ew_b + 6 * Cexp * 4
        return io + interm + 2 * wts + (1 << 20)

    Bt = max(1, min(N, batch_tile))
    while Bt > 1 and vmem_est(Bt) > 24 * 2**20:
        Bt -= 1
    NB = (N + Bt - 1) // Bt
    Npad = NB * Bt
    if Npad != N:
        x = jnp.pad(x, ((0, Npad - N), (0, 0), (0, 0)))

    # raise the scoped-VMEM limit only when the working set needs it (v7x: 64 MiB/TC)
    est = vmem_est(Bt)
    vmem_limit = int(min(56 * 2**20, 2 * est)) if est > 12 * 2**20 else None

    kernel = functools.partial(_mbconv_kernel, H=H, W=W, HW=HW,
                               use_residual=use_residual,
                               ew_dtype=ew_dtype, approx=approx)

    def full(arr):
        nd = arr.ndim
        return pl.BlockSpec(arr.shape, lambda b, _n=nd: (0,) * _n)

    args = (x, rowcol,
            kp['w_exp_t'], kp['bn1b'],
            kp['dw_t'], kp['bn2b'],
            kp['se_w1'], kp['se_w2'],
            kp['w_proj_t'], kp['bn3b'])
    in_specs = ([pl.BlockSpec((Bt, C1, HWp), lambda b: (b, 0, 0))]
                + [full(a) for a in args[1:]])

    out = pl.pallas_call(
        kernel,
        out_shape=jax.ShapeDtypeStruct((Npad, C2, HWp), jnp.float32),
        grid_spec=pltpu.PrefetchScalarGridSpec(
            num_scalar_prefetch=0,
            grid=(NB,),
            in_specs=in_specs,
            out_specs=pl.BlockSpec((Bt, C2, HWp), lambda b: (b, 0, 0)),
        ),
        compiler_params=pltpu.CompilerParams(
            dimension_semantics=("parallel",),     # shards batch tiles over v7x cores
            vmem_limit_bytes=vmem_limit),
    )(*args)
    out = out[:N, :, :HW]                          # drop batch / lane padding
    return out.reshape(N, C2, H, W)


def init_params(key, c1, c2, expand_ratio=4.0, se_ratio=0.25):
    cexp = int(c1 * expand_ratio)
    se_c = max(1, int(c1 * se_ratio))
    ks = jax.random.split(key, 17)

    def n(k, shape, s=0.2):
        return s * jax.random.normal(k, shape, jnp.float32)

    def bn(k0, k1, k2, k3, c):
        # inference BatchNorm folded into scale/bias
        gamma = 1.0 + 0.1 * jax.random.normal(k0, (c,), jnp.float32)
        beta = 0.1 * jax.random.normal(k1, (c,), jnp.float32)
        mean = 0.1 * jax.random.normal(k2, (c,), jnp.float32)
        var = 1.0 + 0.2 * jax.random.uniform(k3, (c,), jnp.float32)
        sc = gamma / jnp.sqrt(var + 1e-5)
        return sc.reshape(1, c), (beta - mean * sc).reshape(1, c)

    bn1s, bn1b = bn(ks[5], ks[6], ks[7], ks[8], cexp)
    bn2s, bn2b = bn(ks[9], ks[10], ks[11], ks[12], cexp)
    bn3s, bn3b = bn(ks[13], ks[14], ks[15], ks[16], c2)
    return dict(
        w_exp=n(ks[0], (c1, cexp)),        # 1x1 expand conv, (Cin, Cout)
        dw=n(ks[1], (9, cexp)),            # depthwise 3x3, (tap, C)
        se_w1=n(ks[2], (cexp, se_c)),      # SE fc1 (transposed vs torch Linear)
        se_w2=n(ks[3], (se_c, cexp)),      # SE fc2
        w_proj=n(ks[4], (cexp, c2)),       # 1x1 project conv
        bn1s=bn1s, bn1b=bn1b, bn2s=bn2s, bn2b=bn2b, bn3s=bn3s, bn3b=bn3b,
    )


def mbconv_reference(x_nchw, p, *, use_residual):
    """Pure-JAX reference (explicit zero padding) for validation."""
    x = jnp.transpose(x_nchw, (0, 2, 3, 1))        # NHWC
    N, H, W, C1 = x.shape
    h = jnp.einsum('nhwc,cd->nhwd', x, p['w_exp'])
    h = h * p['bn1s'][0] + p['bn1b'][0]
    h = h * jax.nn.sigmoid(h)
    hp = jnp.pad(h, ((0, 0), (1, 1), (1, 1), (0, 0)))
    dw = p['dw'].reshape(3, 3, -1)
    acc = jnp.zeros_like(h)
    for ki in range(3):
        for kj in range(3):
            acc = acc + hp[:, ki:ki + H, kj:kj + W, :] * dw[ki, kj]
    g = acc * p['bn2s'][0] + p['bn2b'][0]
    g = g * jax.nn.sigmoid(g)
    pooled = jnp.mean(g, axis=(1, 2))
    s = pooled @ p['se_w1']
    s = s * jax.nn.sigmoid(s)
    s = jax.nn.sigmoid(s @ p['se_w2'])
    g = g * s[:, None, None, :]
    o = jnp.einsum('nhwc,cd->nhwd', g, p['w_proj'])
    o = o * p['bn3s'][0] + p['bn3b'][0]
    if use_residual:
        o = o + x
    return jnp.transpose(o, (0, 3, 1, 2))


if __name__ == "__main__":
    key = jax.random.PRNGKey(0)
    kx, kparam = jax.random.split(key)
    # small shapes consistent with the module: c1=c2=8, expand_ratio=4 -> Cexp=32, se_c=2
    N, C1, C2, H, W = 2, 8, 8, 16, 16
    x = jax.random.normal(kx, (N, C1, H, W), jnp.float32)
    params = init_params(kparam, C1, C2)
    use_residual = (C1 == C2)                      # stride == 1 and c1 == c2

    ref = mbconv_reference(x, params, use_residual=use_residual)

    # precise config: f32 matmul operands + f32 elementwise, exact sigmoid
    out32 = mbconv_pallas(x, params, use_residual=use_residual,
                          matmul_dtype=jnp.float32, ew_dtype=jnp.float32,
                          approx=False)
    out32 = jax.block_until_ready(out32)
    err32 = float(jnp.max(jnp.abs(out32 - ref)))

    # fast config (v6e/v7x): bf16 matmul operands, bf16 depthwise-tap path,
    # EUP approx reciprocal in the sigmoids; expect small quantization error.
    outbf = mbconv_pallas(x, params, use_residual=use_residual,
                          matmul_dtype=jnp.bfloat16, ew_dtype=jnp.bfloat16,
                          approx=True)
    outbf = jax.block_until_ready(outbf)
    errbf = float(jnp.max(jnp.abs(outbf - ref)))

    if out32.shape == (N, C2, H, W) and err32 < 1e-4 and errbf < 1.5e-1:
        print("KERNEL_OK")
    else:
        print("MISMATCH", err32, errbf)
</pallas_src>

<mosaic_0001>
module attributes {stable_mosaic.version = 11 : i64} {
  func.func @_mbconv_kernel(%arg0: i32, %arg1: memref<2x8x256xf32, #tpu.memory_space<vmem>>, %arg2: memref<2x256xi32, #tpu.memory_space<vmem>>, %arg3: memref<32x8xf32, #tpu.memory_space<vmem>>, %arg4: memref<32x1xf32, #tpu.memory_space<vmem>>, %arg5: memref<32x9xf32, #tpu.memory_space<vmem>>, %arg6: memref<32x1xf32, #tpu.memory_space<vmem>>, %arg7: memref<32x2xf32, #tpu.memory_space<vmem>>, %arg8: memref<32x2xf32, #tpu.memory_space<vmem>>, %arg9: memref<8x32xf32, #tpu.memory_space<vmem>>, %arg10: memref<8x1xf32, #tpu.memory_space<vmem>>, %arg11: memref<2x8x256xf32, #tpu.memory_space<vmem>>) attributes {dimension_semantics = [#tpu.dimension_semantics<parallel>], iteration_bounds = array<i64: 1>, scalar_prefetch = 0 : i64, scratch_operands = 0 : i64, tpu.core_type = #tpu.core_type<tc>, window_params = [{transform_indices = @transform_0, window_bounds = array<i64: 2, 8, 256>}, {pipeline_mode = #tpu.pipeline_mode<synchronous>, transform_indices = @transform_1, window_bounds = array<i64: 2, 256>}, {pipeline_mode = #tpu.pipeline_mode<synchronous>, transform_indices = @transform_2, window_bounds = array<i64: 32, 8>}, {pipeline_mode = #tpu.pipeline_mode<synchronous>, transform_indices = @transform_3, window_bounds = array<i64: 32, 1>}, {pipeline_mode = #tpu.pipeline_mode<synchronous>, transform_indices = @transform_4, window_bounds = array<i64: 32, 9>}, {pipeline_mode = #tpu.pipeline_mode<synchronous>, transform_indices = @transform_5, window_bounds = array<i64: 32, 1>}, {pipeline_mode = #tpu.pipeline_mode<synchronous>, transform_indices = @transform_6, window_bounds = array<i64: 32, 2>}, {pipeline_mode = #tpu.pipeline_mode<synchronous>, transform_indices = @transform_7, window_bounds = array<i64: 32, 2>}, {pipeline_mode = #tpu.pipeline_mode<synchronous>, transform_indices = @transform_8, window_bounds = array<i64: 8, 32>}, {pipeline_mode = #tpu.pipeline_mode<synchronous>, transform_indices = @transform_9, window_bounds = array<i64: 8, 1>}, {transform_indices = @transform_10, window_bounds = array<i64: 2, 8, 256>}]} {
    %c0 = arith.constant 0 : index
    %c0_0 = arith.constant 0 : index
    %0 = vector.load %arg2[%c0, %c0_0] : memref<2x256xi32, #tpu.memory_space<vmem>>, vector<1x256xi32>
    %c1 = arith.constant 1 : index
    %c0_1 = arith.constant 0 : index
    %1 = vector.load %arg2[%c1, %c0_1] : memref<2x256xi32, #tpu.memory_space<vmem>>, vector<1x256xi32>
    %c16_i32 = arith.constant 16 : i32
    %2 = vector.broadcast %c16_i32 : i32 to vector<1x256xi32>
    %3 = arith.cmpi slt, %0, %2 : vector<1x256xi32>
    %c16_i32_2 = arith.constant 16 : i32
    %4 = vector.broadcast %c16_i32_2 : i32 to vector<1x256xi32>
    %5 = arith.cmpi slt, %1, %4 : vector<1x256xi32>
    %6 = arith.andi %3, %5 : vector<1x256xi1>
    %c-1_i32 = arith.constant -1 : i32
    %7 = vector.broadcast %c-1_i32 : i32 to vector<1x256xi32>
    %8 = arith.addi %0, %7 : vector<1x256xi32>
    %c0_i32 = arith.constant 0 : i32
    %9 = vector.broadcast %c0_i32 : i32 to vector<1x256xi32>
    %10 = arith.cmpi sge, %8, %9 : vector<1x256xi32>
    %11 = arith.andi %6, %10 : vector<1x256xi1>
    %c-1_i32_3 = arith.constant -1 : i32
    %12 = vector.broadcast %c-1_i32_3 : i32 to vector<1x256xi32>
    %13 = arith.addi %0, %12 : vector<1x256xi32>
    %c16_i32_4 = arith.constant 16 : i32
    %14 = vector.broadcast %c16_i32_4 : i32 to vector<1x256xi32>
    %15 = arith.cmpi slt, %13, %14 : vector<1x256xi32>
    %16 = arith.andi %11, %15 : vector<1x256xi1>
    %c-1_i32_5 = arith.constant -1 : i32
    %17 = vector.broadcast %c-1_i32_5 : i32 to vector<1x256xi32>
    %18 = arith.addi %1, %17 : vector<1x256xi32>
    %c0_i32_6 = arith.constant 0 : i32
    %19 = vector.broadcast %c0_i32_6 : i32 to vector<1x256xi32>
    %20 = arith.cmpi sge, %18, %19 : vector<1x256xi32>
    %21 = arith.andi %16, %20 : vector<1x256xi1>
    %c-1_i32_7 = arith.constant -1 : i32
    %22 = vector.broadcast %c-1_i32_7 : i32 to vector<1x256xi32>
    %23 = arith.addi %1, %22 : vector<1x256xi32>
    %c16_i32_8 = arith.constant 16 : i32
    %24 = vector.broadcast %c16_i32_8 : i32 to vector<1x256xi32>
    %25 = arith.cmpi slt, %23, %24 : vector<1x256xi32>
    %26 = arith.andi %21, %25 : vector<1x256xi1>
    %27 = arith.extui %26 : vector<1x256xi1> to vector<1x256xi32>
    %28 = arith.sitofp %27 : vector<1x256xi32> to vector<1x256xf32>
    %c-1_i32_9 = arith.constant -1 : i32
    %29 = vector.broadcast %c-1_i32_9 : i32 to vector<1x256xi32>
    %30 = arith.addi %0, %29 : vector<1x256xi32>
    %c0_i32_10 = arith.constant 0 : i32
    %31 = vector.broadcast %c0_i32_10 : i32 to vector<1x256xi32>
    %32 = arith.cmpi sge, %30, %31 : vector<1x256xi32>
    %33 = arith.andi %6, %32 : vector<1x256xi1>
    %c-1_i32_11 = arith.constant -1 : i32
    %34 = vector.broadcast %c-1_i32_11 : i32 to vector<1x256xi32>
    %35 = arith.addi %0, %34 : vector<1x256xi32>
    %c16_i32_12 = arith.constant 16 : i32
    %36 = vector.broadcast %c16_i32_12 : i32 to vector<1x256xi32>
    %37 = arith.cmpi slt, %35, %36 : vector<1x256xi32>
    %38 = arith.andi %33, %37 : vector<1x256xi1>
    %c0_i32_13 = arith.constant 0 : i32
    %39 = vector.broadcast %c0_i32_13 : i32 to vector<1x256xi32>
    %40 = arith.addi %1, %39 : vector<1x256xi32>
    %c0_i32_14 = arith.constant 0 : i32
    %41 = vector.broadcast %c0_i32_14 : i32 to vector<1x256xi32>
    %42 = arith.cmpi sge, %40, %41 : vector<1x256xi32>
    %43 = arith.andi %38, %42 : vector<1x256xi1>
    %c0_i32_15 = arith.constant 0 : i32
    %44 = vector.broadcast %c0_i32_15 : i32 to vector<1x256xi32>
    %45 = arith.addi %1, %44 : vector<1x256xi32>
    %c16_i32_16 = arith.constant 16 : i32
    %46 = vector.broadcast %c16_i32_16 : i32 to vector<1x256xi32>
    %47 = arith.cmpi slt, %45, %46 : vector<1x256xi32>
    %48 = arith.andi %43, %47 : vector<1x256xi1>
    %49 = arith.extui %48 : vector<1x256xi1> to vector<1x256xi32>
    %50 = arith.sitofp %49 : vector<1x256xi32> to vector<1x256xf32>
    %c-1_i32_17 = arith.constant -1 : i32
    %51 = vector.broadcast %c-1_i32_17 : i32 to vector<1x256xi32>
    %52 = arith.addi %0, %51 : vector<1x256xi32>
    %c0_i32_18 = arith.constant 0 : i32
    %53 = vector.broadcast %c0_i32_18 : i32 to vector<1x256xi32>
    %54 = arith.cmpi sge, %52, %53 : vector<1x256xi32>
    %55 = arith.andi %6, %54 : vector<1x256xi1>
    %c-1_i32_19 = arith.constant -1 : i32
    %56 = vector.broadcast %c-1_i32_19 : i32 to vector<1x256xi32>
    %57 = arith.addi %0, %56 : vector<1x256xi32>
    %c16_i32_20 = arith.constant 16 : i32
    %58 = vector.broadcast %c16_i32_20 : i32 to vector<1x256xi32>
    %59 = arith.cmpi slt, %57, %58 : vector<1x256xi32>
    %60 = arith.andi %55, %59 : vector<1x256xi1>
    %c1_i32 = arith.constant 1 : i32
    %61 = vector.broadcast %c1_i32 : i32 to vector<1x256xi32>
    %62 = arith.addi %1, %61 : vector<1x256xi32>
    %c0_i32_21 = arith.constant 0 : i32
    %63 = vector.broadcast %c0_i32_21 : i32 to vector<1x256xi32>
    %64 = arith.cmpi sge, %62, %63 : vector<1x256xi32>
    %65 = arith.andi %60, %64 : vector<1x256xi1>
    %c1_i32_22 = arith.constant 1 : i32
    %66 = vector.broadcast %c1_i32_22 : i32 to vector<1x256xi32>
    %67 = arith.addi %1, %66 : vector<1x256xi32>
    %c16_i32_23 = arith.constant 16 : i32
    %68 = vector.broadcast %c16_i32_23 : i32 to vector<1x256xi32>
    %69 = arith.cmpi slt, %67, %68 : vector<1x256xi32>
    %70 = arith.andi %65, %69 : vector<1x256xi1>
    %71 = arith.extui %70 : vector<1x256xi1> to vector<1x256xi32>
    %72 = arith.sitofp %71 : vector<1x256xi32> to vector<1x256xf32>
    %c0_i32_24 = arith.constant 0 : i32
    %73 = vector.broadcast %c0_i32_24 : i32 to vector<1x256xi32>
    %74 = arith.addi %0, %73 : vector<1x256xi32>
    %c0_i32_25 = arith.constant 0 : i32
    %75 = vector.broadcast %c0_i32_25 : i32 to vector<1x256xi32>
    %76 = arith.cmpi sge, %74, %75 : vector<1x256xi32>
    %77 = arith.andi %6, %76 : vector<1x256xi1>
    %c0_i32_26 = arith.constant 0 : i32
    %78 = vector.broadcast %c0_i32_26 : i32 to vector<1x256xi32>
    %79 = arith.addi %0, %78 : vector<1x256xi32>
    %c16_i32_27 = arith.constant 16 : i32
    %80 = vector.broadcast %c16_i32_27 : i32 to vector<1x256xi32>
    %81 = arith.cmpi slt, %79, %80 : vector<1x256xi32>
    %82 = arith.andi %77, %81 : vector<1x256xi1>
    %c-1_i32_28 = arith.constant -1 : i32
    %83 = vector.broadcast %c-1_i32_28 : i32 to vector<1x256xi32>
    %84 = arith.addi %1, %83 : vector<1x256xi32>
    %c0_i32_29 = arith.constant 0 : i32
    %85 = vector.broadcast %c0_i32_29 : i32 to vector<1x256xi32>
    %86 = arith.cmpi sge, %84, %85 : vector<1x256xi32>
    %87 = arith.andi %82, %86 : vector<1x256xi1>
    %c-1_i32_30 = arith.constant -1 : i32
    %88 = vector.broadcast %c-1_i32_30 : i32 to vector<1x256xi32>
    %89 = arith.addi %1, %88 : vector<1x256xi32>
    %c16_i32_31 = arith.constant 16 : i32
    %90 = vector.broadcast %c16_i32_31 : i32 to vector<1x256xi32>
    %91 = arith.cmpi slt, %89, %90 : vector<1x256xi32>
    %92 = arith.andi %87, %91 : vector<1x256xi1>
    %93 = arith.extui %92 : vector<1x256xi1> to vector<1x256xi32>
    %94 = arith.sitofp %93 : vector<1x256xi32> to vector<1x256xf32>
    %c0_i32_32 = arith.constant 0 : i32
    %95 = vector.broadcast %c0_i32_32 : i32 to vector<1x256xi32>
    %96 = arith.addi %0, %95 : vector<1x256xi32>
    %c0_i32_33 = arith.constant 0 : i32
    %97 = vector.broadcast %c0_i32_33 : i32 to vector<1x256xi32>
    %98 = arith.cmpi sge, %96, %97 : vector<1x256xi32>
    %99 = arith.andi %6, %98 : vector<1x256xi1>
    %c0_i32_34 = arith.constant 0 : i32
    %100 = vector.broadcast %c0_i32_34 : i32 to vector<1x256xi32>
    %101 = arith.addi %0, %100 : vector<1x256xi32>
    %c16_i32_35 = arith.constant 16 : i32
    %102 = vector.broadcast %c16_i32_35 : i32 to vector<1x256xi32>
    %103 = arith.cmpi slt, %101, %102 : vector<1x256xi32>
    %104 = arith.andi %99, %103 : vector<1x256xi1>
    %c1_i32_36 = arith.constant 1 : i32
    %105 = vector.broadcast %c1_i32_36 : i32 to vector<1x256xi32>
    %106 = arith.addi %1, %105 : vector<1x256xi32>
    %c0_i32_37 = arith.constant 0 : i32
    %107 = vector.broadcast %c0_i32_37 : i32 to vector<1x256xi32>
    %108 = arith.cmpi sge, %106, %107 : vector<1x256xi32>
    %109 = arith.andi %104, %108 : vector<1x256xi1>
    %c1_i32_38 = arith.constant 1 : i32
    %110 = vector.broadcast %c1_i32_38 : i32 to vector<1x256xi32>
    %111 = arith.addi %1, %110 : vector<1x256xi32>
    %c16_i32_39 = arith.constant 16 : i32
    %112 = vector.broadcast %c16_i32_39 : i32 to vector<1x256xi32>
    %113 = arith.cmpi slt, %111, %112 : vector<1x256xi32>
    %114 = arith.andi %109, %113 : vector<1x256xi1>
    %115 = arith.extui %114 : vector<1x256xi1> to vector<1x256xi32>
    %116 = arith.sitofp %115 : vector<1x256xi32> to vector<1x256xf32>
    %c1_i32_40 = arith.constant 1 : i32
    %117 = vector.broadcast %c1_i32_40 : i32 to vector<1x256xi32>
    %118 = arith.addi %0, %117 : vector<1x256xi32>
    %c0_i32_41 = arith.constant 0 : i32
    %119 = vector.broadcast %c0_i32_41 : i32 to vector<1x256xi32>
    %120 = arith.cmpi sge, %118, %119 : vector<1x256xi32>
    %121 = arith.andi %6, %120 : vector<1x256xi1>
    %c1_i32_42 = arith.constant 1 : i32
    %122 = vector.broadcast %c1_i32_42 : i32 to vector<1x256xi32>
    %123 = arith.addi %0, %122 : vector<1x256xi32>
    %c16_i32_43 = arith.constant 16 : i32
    %124 = vector.broadcast %c16_i32_43 : i32 to vector<1x256xi32>
    %125 = arith.cmpi slt, %123, %124 : vector<1x256xi32>
    %126 = arith.andi %121, %125 : vector<1x256xi1>
    %c-1_i32_44 = arith.constant -1 : i32
    %127 = vector.broadcast %c-1_i32_44 : i32 to vector<1x256xi32>
    %128 = arith.addi %1, %127 : vector<1x256xi32>
    %c0_i32_45 = arith.constant 0 : i32
    %129 = vector.broadcast %c0_i32_45 : i32 to vector<1x256xi32>
    %130 = arith.cmpi sge, %128, %129 : vector<1x256xi32>
    %131 = arith.andi %126, %130 : vector<1x256xi1>
    %c-1_i32_46 = arith.constant -1 : i32
    %132 = vector.broadcast %c-1_i32_46 : i32 to vector<1x256xi32>
    %133 = arith.addi %1, %132 : vector<1x256xi32>
    %c16_i32_47 = arith.constant 16 : i32
    %134 = vector.broadcast %c16_i32_47 : i32 to vector<1x256xi32>
    %135 = arith.cmpi slt, %133, %134 : vector<1x256xi32>
    %136 = arith.andi %131, %135 : vector<1x256xi1>
    %137 = arith.extui %136 : vector<1x256xi1> to vector<1x256xi32>
    %138 = arith.sitofp %137 : vector<1x256xi32> to vector<1x256xf32>
    %c1_i32_48 = arith.constant 1 : i32
    %139 = vector.broadcast %c1_i32_48 : i32 to vector<1x256xi32>
    %140 = arith.addi %0, %139 : vector<1x256xi32>
    %c0_i32_49 = arith.constant 0 : i32
    %141 = vector.broadcast %c0_i32_49 : i32 to vector<1x256xi32>
    %142 = arith.cmpi sge, %140, %141 : vector<1x256xi32>
    %143 = arith.andi %6, %142 : vector<1x256xi1>
    %c1_i32_50 = arith.constant 1 : i32
    %144 = vector.broadcast %c1_i32_50 : i32 to vector<1x256xi32>
    %145 = arith.addi %0, %144 : vector<1x256xi32>
    %c16_i32_51 = arith.constant 16 : i32
    %146 = vector.broadcast %c16_i32_51 : i32 to vector<1x256xi32>
    %147 = arith.cmpi slt, %145, %146 : vector<1x256xi32>
    %148 = arith.andi %143, %147 : vector<1x256xi1>
    %c0_i32_52 = arith.constant 0 : i32
    %149 = vector.broadcast %c0_i32_52 : i32 to vector<1x256xi32>
    %150 = arith.addi %1, %149 : vector<1x256xi32>
    %c0_i32_53 = arith.constant 0 : i32
    %151 = vector.broadcast %c0_i32_53 : i32 to vector<1x256xi32>
    %152 = arith.cmpi sge, %150, %151 : vector<1x256xi32>
    %153 = arith.andi %148, %152 : vector<1x256xi1>
    %c0_i32_54 = arith.constant 0 : i32
    %154 = vector.broadcast %c0_i32_54 : i32 to vector<1x256xi32>
    %155 = arith.addi %1, %154 : vector<1x256xi32>
    %c16_i32_55 = arith.constant 16 : i32
    %156 = vector.broadcast %c16_i32_55 : i32 to vector<1x256xi32>
    %157 = arith.cmpi slt, %155, %156 : vector<1x256xi32>
    %158 = arith.andi %153, %157 : vector<1x256xi1>
    %159 = arith.extui %158 : vector<1x256xi1> to vector<1x256xi32>
    %160 = arith.sitofp %159 : vector<1x256xi32> to vector<1x256xf32>
    %c1_i32_56 = arith.constant 1 : i32
    %161 = vector.broadcast %c1_i32_56 : i32 to vector<1x256xi32>
    %162 = arith.addi %0, %161 : vector<1x256xi32>
    %c0_i32_57 = arith.constant 0 : i32
    %163 = vector.broadcast %c0_i32_57 : i32 to vector<1x256xi32>
    %164 = arith.cmpi sge, %162, %163 : vector<1x256xi32>
    %165 = arith.andi %6, %164 : vector<1x256xi1>
    %c1_i32_58 = arith.constant 1 : i32
    %166 = vector.broadcast %c1_i32_58 : i32 to vector<1x256xi32>
    %167 = arith.addi %0, %166 : vector<1x256xi32>
    %c16_i32_59 = arith.constant 16 : i32
    %168 = vector.broadcast %c16_i32_59 : i32 to vector<1x256xi32>
    %169 = arith.cmpi slt, %167, %168 : vector<1x256xi32>
    %170 = arith.andi %165, %169 : vector<1x256xi1>
    %c1_i32_60 = arith.constant 1 : i32
    %171 = vector.broadcast %c1_i32_60 : i32 to vector<1x256xi32>
    %172 = arith.addi %1, %171 : vector<1x256xi32>
    %c0_i32_61 = arith.constant 0 : i32
    %173 = vector.broadcast %c0_i32_61 : i32 to vector<1x256xi32>
    %174 = arith.cmpi sge, %172, %173 : vector<1x256xi32>
    %175 = arith.andi %170, %174 : vector<1x256xi1>
    %c1_i32_62 = arith.constant 1 : i32
    %176 = vector.broadcast %c1_i32_62 : i32 to vector<1x256xi32>
    %177 = arith.addi %1, %176 : vector<1x256xi32>
    %c16_i32_63 = arith.constant 16 : i32
    %178 = vector.broadcast %c16_i32_63 : i32 to vector<1x256xi32>
    %179 = arith.cmpi slt, %177, %178 : vector<1x256xi32>
    %180 = arith.andi %175, %179 : vector<1x256xi1>
    %181 = arith.extui %180 : vector<1x256xi1> to vector<1x256xi32>
    %182 = arith.sitofp %181 : vector<1x256xi32> to vector<1x256xf32>
    %c0_64 = arith.constant 0 : index
    %c0_65 = arith.constant 0 : index
    %c0_66 = arith.constant 0 : index
    %183 = vector.load %arg1[%c0_64, %c0_65, %c0_66] : memref<2x8x256xf32, #tpu.memory_space<vmem>>, vector<1x8x256xf32>
    %184 = vector.shape_cast %183 : vector<1x8x256xf32> to vector<8x256xf32>
    %c0_67 = arith.constant 0 : index
    %c0_68 = arith.constant 0 : index
    %185 = vector.load %arg3[%c0_67, %c0_68] : memref<32x8xf32, #tpu.memory_space<vmem>>, vector<32x8xf32>
    %cst = arith.constant dense<0.000000e+00> : vector<32x256xf32>
    %186 = tpu.matmul %185, %184, %cst {dimension_numbers = #tpu.dot_dimension_numbers<[1], [0], [0], [1], [0, 0, 1, 1], [], []>} : vector<32x8xf32>, vector<8x256xf32>, vector<32x256xf32> -> vector<32x256xf32>
    %c0_69 = arith.constant 0 : index
    %c0_70 = arith.constant 0 : index
    %187 = vector.load %arg4[%c0_69, %c0_70] : memref<32x1xf32, #tpu.memory_space<vmem>>, vector<32x1xf32>
    %188 = vector.broadcast %187 : vector<32x1xf32> to vector<32x256xf32>
    %189 = arith.addf %186, %188 : vector<32x256xf32>
    %190 = arith.negf %189 : vector<32x256xf32>
    %191 = math.exp %190 : vector<32x256xf32>
    %cst_71 = arith.constant 1.000000e+00 : f32
    %192 = vector.broadcast %cst_71 : f32 to vector<32x256xf32>
    %193 = arith.addf %192, %191 : vector<32x256xf32>
    %194 = arith.divf %192, %193 : vector<32x256xf32>
    %195 = arith.mulf %189, %194 : vector<32x256xf32>
    %c0_72 = arith.constant 0 : index
    %c4 = arith.constant 4 : index
    %196 = vector.load %arg5[%c0_72, %c4] : memref<32x9xf32, #tpu.memory_space<vmem>>, vector<32x1xf32>
    %197 = vector.broadcast %196 : vector<32x1xf32> to vector<32x256xf32>
    %198 = arith.mulf %195, %197 : vector<32x256xf32>
    %c17_i32 = arith.constant 17 : i32
    %199 = tpu.dynamic_rotate %195 by %c17_i32 dim 1 : vector<32x256xf32>, i32 -> vector<32x256xf32>
    %c0_73 = arith.constant 0 : index
    %c0_74 = arith.constant 0 : index
    %200 = vector.load %arg5[%c0_73, %c0_74] : memref<32x9xf32, #tpu.memory_space<vmem>>, vector<32x1xf32>
    %201 = vector.broadcast %200 : vector<32x1xf32> to vector<32x256xf32>
    %202 = arith.mulf %199, %201 : vector<32x256xf32>
    %203 = vector.broadcast %28 : vector<1x256xf32> to vector<32x256xf32>
    %204 = arith.mulf %202, %203 : vector<32x256xf32>
    %205 = arith.addf %198, %204 : vector<32x256xf32>
    %c16_i32_75 = arith.constant 16 : i32
    %206 = tpu.dynamic_rotate %195 by %c16_i32_75 dim 1 : vector<32x256xf32>, i32 -> vector<32x256xf32>
    %c0_76 = arith.constant 0 : index
    %c1_77 = arith.constant 1 : index
    %207 = vector.load %arg5[%c0_76, %c1_77] : memref<32x9xf32, #tpu.memory_space<vmem>>, vector<32x1xf32>
    %208 = vector.broadcast %207 : vector<32x1xf32> to vector<32x256xf32>
    %209 = arith.mulf %206, %208 : vector<32x256xf32>
    %210 = vector.broadcast %50 : vector<1x256xf32> to vector<32x256xf32>
    %211 = arith.mulf %209, %210 : vector<32x256xf32>
    %212 = arith.addf %205, %211 : vector<32x256xf32>
    %c15_i32 = arith.constant 15 : i32
    %213 = tpu.dynamic_rotate %195 by %c15_i32 dim 1 : vector<32x256xf32>, i32 -> vector<32x256xf32>
    %c0_78 = arith.constant 0 : index
    %c2 = arith.constant 2 : index
    %214 = vector.load %arg5[%c0_78, %c2] : memref<32x9xf32, #tpu.memory_space<vmem>>, vector<32x1xf32>
    %215 = vector.broadcast %214 : vector<32x1xf32> to vector<32x256xf32>
    %216 = arith.mulf %213, %215 : vector<32x256xf32>
    %217 = vector.broadcast %72 : vector<1x256xf32> to vector<32x256xf32>
    %218 = arith.mulf %216, %217 : vector<32x256xf32>
    %219 = arith.addf %212, %218 : vector<32x256xf32>
    %c1_i32_79 = arith.constant 1 : i32
    %220 = tpu.dynamic_rotate %195 by %c1_i32_79 dim 1 : vector<32x256xf32>, i32 -> vector<32x256xf32>
    %c0_80 = arith.constant 0 : index
    %c3 = arith.constant 3 : index
    %221 = vector.load %arg5[%c0_80, %c3] : memref<32x9xf32, #tpu.memory_space<vmem>>, vector<32x1xf32>
    %222 = vector.broadcast %221 : vector<32x1xf32> to vector<32x256xf32>
    %223 = arith.mulf %220, %222 : vector<32x256xf32>
    %224 = vector.broadcast %94 : vector<1x256xf32> to vector<32x256xf32>
    %225 = arith.mulf %223, %224 : vector<32x256xf32>
    %226 = arith.addf %219, %225 : vector<32x256xf32>
    %c255_i32 = arith.constant 255 : i32
    %227 = tpu.dynamic_rotate %195 by %c255_i32 dim 1 : vector<32x256xf32>, i32 -> vector<32x256xf32>
    %c0_81 = arith.constant 0 : index
    %c5 = arith.constant 5 : index
    %228 = vector.load %arg5[%c0_81, %c5] : memref<32x9xf32, #tpu.memory_space<vmem>>, vector<32x1xf32>
    %229 = vector.broadcast %228 : vector<32x1xf32> to vector<32x256xf32>
    %230 = arith.mulf %227, %229 : vector<32x256xf32>
    %231 = vector.broadcast %116 : vector<1x256xf32> to vector<32x256xf32>
    %232 = arith.mulf %230, %231 : vector<32x256xf32>
    %233 = arith.addf %226, %232 : vector<32x256xf32>
    %c241_i32 = arith.constant 241 : i32
    %234 = tpu.dynamic_rotate %195 by %c241_i32 dim 1 : vector<32x256xf32>, i32 -> vector<32x256xf32>
    %c0_82 = arith.constant 0 : index
    %c6 = arith.constant 6 : index
    %235 = vector.load %arg5[%c0_82, %c6] : memref<32x9xf32, #tpu.memory_space<vmem>>, vector<32x1xf32>
    %236 = vector.broadcast %235 : vector<32x1xf32> to vector<32x256xf32>
    %237 = arith.mulf %234, %236 : vector<32x256xf32>
    %238 = vector.broadcast %138 : vector<1x256xf32> to vector<32x256xf32>
    %239 = arith.mulf %237, %238 : vector<32x256xf32>
    %240 = arith.addf %233, %239 : vector<32x256xf32>
    %c240_i32 = arith.constant 240 : i32
    %241 = tpu.dynamic_rotate %195 by %c240_i32 dim 1 : vector<32x256xf32>, i32 -> vector<32x256xf32>
    %c0_83 = arith.constant 0 : index
    %c7 = arith.constant 7 : index
    %242 = vector.load %arg5[%c0_83, %c7] : memref<32x9xf32, #tpu.memory_space<vmem>>, vector<32x1xf32>
    %243 = vector.broadcast %242 : vector<32x1xf32> to vector<32x256xf32>
    %244 = arith.mulf %241, %243 : vector<32x256xf32>
    %245 = vector.broadcast %160 : vector<1x256xf32> to vector<32x256xf32>
    %246 = arith.mulf %244, %245 : vector<32x256xf32>
    %247 = arith.addf %240, %246 : vector<32x256xf32>
    %c239_i32 = arith.constant 239 : i32
    %248 = tpu.dynamic_rotate %195 by %c239_i32 dim 1 : vector<32x256xf32>, i32 -> vector<32x256xf32>
    %c0_84 = arith.constant 0 : index
    %c8 = arith.constant 8 : index
    %249 = vector.load %arg5[%c0_84, %c8] : memref<32x9xf32, #tpu.memory_space<vmem>>, vector<32x1xf32>
    %250 = vector.broadcast %249 : vector<32x1xf32> to vector<32x256xf32>
    %251 = arith.mulf %248, %250 : vector<32x256xf32>
    %252 = vector.broadcast %182 : vector<1x256xf32> to vector<32x256xf32>
    %253 = arith.mulf %251, %252 : vector<32x256xf32>
    %254 = arith.addf %247, %253 : vector<32x256xf32>
    %c0_85 = arith.constant 0 : index
    %c0_86 = arith.constant 0 : index
    %255 = vector.load %arg6[%c0_85, %c0_86] : memref<32x1xf32, #tpu.memory_space<vmem>>, vector<32x1xf32>
    %256 = vector.broadcast %255 : vector<32x1xf32> to vector<32x256xf32>
    %257 = arith.addf %254, %256 : vector<32x256xf32>
    %258 = arith.negf %257 : vector<32x256xf32>
    %259 = math.exp %258 : vector<32x256xf32>
    %cst_87 = arith.constant 1.000000e+00 : f32
    %260 = vector.broadcast %cst_87 : f32 to vector<32x256xf32>
    %261 = arith.addf %260, %259 : vector<32x256xf32>
    %262 = arith.divf %260, %261 : vector<32x256xf32>
    %263 = arith.mulf %257, %262 : vector<32x256xf32>
    %cst_88 = arith.constant dense<0.000000e+00> : vector<32xf32>
    %264 = vector.multi_reduction <add>, %263, %cst_88 [1] : vector<32x256xf32> to vector<32xf32>
    %265 = vector.shape_cast %264 : vector<32xf32> to vector<32x1xf32>
    %cst_89 = arith.constant 3.906250e-03 : f32
    %266 = vector.broadcast %cst_89 : f32 to vector<32x1xf32>
    %267 = arith.mulf %265, %266 : vector<32x1xf32>
    %c0_90 = arith.constant 0 : index
    %c0_91 = arith.constant 0 : index
    %268 = vector.load %arg7[%c0_90, %c0_91] : memref<32x2xf32, #tpu.memory_space<vmem>>, vector<32x2xf32>
    %269 = vector.broadcast %267 : vector<32x1xf32> to vector<32x2xf32>
    %270 = arith.mulf %269, %268 : vector<32x2xf32>
    %cst_92 = arith.constant dense<0.000000e+00> : vector<2xf32>
    %271 = vector.multi_reduction <add>, %270, %cst_92 [0] : vector<32x2xf32> to vector<2xf32>
    %272 = vector.shape_cast %271 : vector<2xf32> to vector<1x2xf32>
    %273 = arith.negf %272 : vector<1x2xf32>
    %274 = math.exp %273 : vector<1x2xf32>
    %cst_93 = arith.constant 1.000000e+00 : f32
    %275 = vector.broadcast %cst_93 : f32 to vector<1x2xf32>
    %276 = arith.addf %275, %274 : vector<1x2xf32>
    %277 = arith.divf %275, %276 : vector<1x2xf32>
    %278 = arith.mulf %272, %277 : vector<1x2xf32>
    %c0_94 = arith.constant 0 : index
    %c0_95 = arith.constant 0 : index
    %279 = vector.load %arg8[%c0_94, %c0_95] : memref<32x2xf32, #tpu.memory_space<vmem>>, vector<32x2xf32>
    %280 = vector.broadcast %278 : vector<1x2xf32> to vector<32x2xf32>
    %281 = arith.mulf %279, %280 : vector<32x2xf32>
    %cst_96 = arith.constant dense<0.000000e+00> : vector<32xf32>
    %282 = vector.multi_reduction <add>, %281, %cst_96 [1] : vector<32x2xf32> to vector<32xf32>
    %283 = vector.shape_cast %282 : vector<32xf32> to vector<32x1xf32>
    %284 = arith.negf %283 : vector<32x1xf32>
    %285 = math.exp %284 : vector<32x1xf32>
    %cst_97 = arith.constant 1.000000e+00 : f32
    %286 = vector.broadcast %cst_97 : f32 to vector<32x1xf32>
    %287 = arith.addf %286, %285 : vector<32x1xf32>
    %288 = arith.divf %286, %287 : vector<32x1xf32>
    %289 = vector.broadcast %288 : vector<32x1xf32> to vector<32x256xf32>
    %290 = arith.mulf %263, %289 : vector<32x256xf32>
    %c0_98 = arith.constant 0 : index
    %c0_99 = arith.constant 0 : index
    %291 = vector.load %arg9[%c0_98, %c0_99] : memref<8x32xf32, #tpu.memory_space<vmem>>, vector<8x32xf32>
    %cst_100 = arith.constant dense<0.000000e+00> : vector<8x256xf32>
    %292 = tpu.matmul %291, %290, %cst_100 {dimension_numbers = #tpu.dot_dimension_numbers<[1], [0], [0], [1], [0, 0, 1, 1], [], []>} : vector<8x32xf32>, vector<32x256xf32>, vector<8x256xf32> -> vector<8x256xf32>
    %c0_101 = arith.constant 0 : index
    %c0_102 = arith.constant 0 : index
    %293 = vector.load %arg10[%c0_101, %c0_102] : memref<8x1xf32, #tpu.memory_space<vmem>>, vector<8x1xf32>
    %294 = vector.broadcast %293 : vector<8x1xf32> to vector<8x256xf32>
    %295 = arith.addf %292, %294 : vector<8x256xf32>
    %296 = arith.addf %295, %184 : vector<8x256xf32>
    %c0_103 = arith.constant 0 : index
    %c0_104 = arith.constant 0 : index
    %c0_105 = arith.constant 0 : index
    %297 = vector.load %arg11[%c0_103, %c0_104, %c0_105] : memref<2x8x256xf32, #tpu.memory_space<vmem>>, vector<1x8x256xf32>
    %298 = vector.shape_cast %297 : vector<1x8x256xf32> to vector<8x256xf32>
    %299 = vector.shape_cast %296 : vector<8x256xf32> to vector<1x8x256xf32>
    tpu.vector_store %arg11[%c0_103, %c0_104, %c0_105], %299 {strides = array<i32>} : memref<2x8x256xf32, #tpu.memory_space<vmem>>, vector<1x8x256xf32>,
    %c1_106 = arith.constant 1 : index
    %c0_107 = arith.constant 0 : index
    %c0_108 = arith.constant 0 : index
    %300 = vector.load %arg1[%c1_106, %c0_107, %c0_108] : memref<2x8x256xf32, #tpu.memory_space<vmem>>, vector<1x8x256xf32>
    %301 = vector.shape_cast %300 : vector<1x8x256xf32> to vector<8x256xf32>
    %c0_109 = arith.constant 0 : index
    %c0_110 = arith.constant 0 : index
    %302 = vector.load %arg3[%c0_109, %c0_110] : memref<32x8xf32, #tpu.memory_space<vmem>>, vector<32x8xf32>
    %cst_111 = arith.constant dense<0.000000e+00> : vector<32x256xf32>
    %303 = tpu.matmul %302, %301, %cst_111 {dimension_numbers = #tpu.dot_dimension_numbers<[1], [0], [0], [1], [0, 0, 1, 1], [], []>} : vector<32x8xf32>, vector<8x256xf32>, vector<32x256xf32> -> vector<32x256xf32>
    %c0_112 = arith.constant 0 : index
    %c0_113 = arith.constant 0 : index
    %304 = vector.load %arg4[%c0_112, %c0_113] : memref<32x1xf32, #tpu.memory_space<vmem>>, vector<32x1xf32>
    %305 = vector.broadcast %304 : vector<32x1xf32> to vector<32x256xf32>
    %306 = arith.addf %303, %305 : vector<32x256xf32>
    %307 = arith.negf %306 : vector<32x256xf32>
    %308 = math.exp %307 : vector<32x256xf32>
    %cst_114 = arith.constant 1.000000e+00 : f32
    %309 = vector.broadcast %cst_114 : f32 to vector<32x256xf32>
    %310 = arith.addf %309, %308 : vector<32x256xf32>
    %311 = arith.divf %309, %310 : vector<32x256xf32>
    %312 = arith.mulf %306, %311 : vector<32x256xf32>
    %c0_115 = arith.constant 0 : index
    %c4_116 = arith.constant 4 : index
    %313 = vector.load %arg5[%c0_115, %c4_116] : memref<32x9xf32, #tpu.memory_space<vmem>>, vector<32x1xf32>
    %314 = vector.broadcast %313 : vector<32x1xf32> to vector<32x256xf32>
    %315 = arith.mulf %312, %314 : vector<32x256xf32>
    %c17_i32_117 = arith.constant 17 : i32
    %316 = tpu.dynamic_rotate %312 by %c17_i32_117 dim 1 : vector<32x256xf32>, i32 -> vector<32x256xf32>
    %c0_118 = arith.constant 0 : index
    %c0_119 = arith.constant 0 : index
    %317 = vector.load %arg5[%c0_118, %c0_119] : memref<32x9xf32, #tpu.memory_space<vmem>>, vector<32x1xf32>
    %318 = vector.broadcast %317 : vector<32x1xf32> to vector<32x256xf32>
    %319 = arith.mulf %316, %318 : vector<32x256xf32>
    %320 = vector.broadcast %28 : vector<1x256xf32> to vector<32x256xf32>
    %321 = arith.mulf %319, %320 : vector<32x256xf32>
    %322 = arith.addf %315, %321 : vector<32x256xf32>
    %c16_i32_120 = arith.constant 16 : i32
    %323 = tpu.dynamic_rotate %312 by %c16_i32_120 dim 1 : vector<32x256xf32>, i32 -> vector<32x256xf32>
    %c0_121 = arith.constant 0 : index
    %c1_122 = arith.constant 1 : index
    %324 = vector.load %arg5[%c0_121, %c1_122] : memref<32x9xf32, #tpu.memory_space<vmem>>, vector<32x1xf32>
    %325 = vector.broadcast %324 : vector<32x1xf32> to vector<32x256xf32>
    %326 = arith.mulf %323, %325 : vector<32x256xf32>
    %327 = vector.broadcast %50 : vector<1x256xf32> to vector<32x256xf32>
    %328 = arith.mulf %326, %327 : vector<32x256xf32>
    %329 = arith.addf %322, %328 : vector<32x256xf32>
    %c15_i32_123 = arith.constant 15 : i32
    %330 = tpu.dynamic_rotate %312 by %c15_i32_123 dim 1 : vector<32x256xf32>, i32 -> vector<32x256xf32>
    %c0_124 = arith.constant 0 : index
    %c2_125 = arith.constant 2 : index
    %331 = vector.load %arg5[%c0_124, %c2_125] : memref<32x9xf32, #tpu.memory_space<vmem>>, vector<32x1xf32>
    %332 = vector.broadcast %331 : vector<32x1xf32> to vector<32x256xf32>
    %333 = arith.mulf %330, %332 : vector<32x256xf32>
    %334 = vector.broadcast %72 : vector<1x256xf32> to vector<32x256xf32>
    %335 = arith.mulf %333, %334 : vector<32x256xf32>
    %336 = arith.addf %329, %335 : vector<32x256xf32>
    %c1_i32_126 = arith.constant 1 : i32
    %337 = tpu.dynamic_rotate %312 by %c1_i32_126 dim 1 : vector<32x256xf32>, i32 -> vector<32x256xf32>
    %c0_127 = arith.constant 0 : index
    %c3_128 = arith.constant 3 : index
    %338 = vector.load %arg5[%c0_127, %c3_128] : memref<32x9xf32, #tpu.memory_space<vmem>>, vector<32x1xf32>
    %339 = vector.broadcast %338 : vector<32x1xf32> to vector<32x256xf32>
    %340 = arith.mulf %337, %339 : vector<32x256xf32>
    %341 = vector.broadcast %94 : vector<1x256xf32> to vector<32x256xf32>
    %342 = arith.mulf %340, %341 : vector<32x256xf32>
    %343 = arith.addf %336, %342 : vector<32x256xf32>
    %c255_i32_129 = arith.constant 255 : i32
    %344 = tpu.dynamic_rotate %312 by %c255_i32_129 dim 1 : vector<32x256xf32>, i32 -> vector<32x256xf32>
    %c0_130 = arith.constant 0 : index
    %c5_131 = arith.constant 5 : index
    %345 = vector.load %arg5[%c0_130, %c5_131] : memref<32x9xf32, #tpu.memory_space<vmem>>, vector<32x1xf32>
    %346 = vector.broadcast %345 : vector<32x1xf32> to vector<32x256xf32>
    %347 = arith.mulf %344, %346 : vector<32x256xf32>
    %348 = vector.broadcast %116 : vector<1x256xf32> to vector<32x256xf32>
    %349 = arith.mulf %347, %348 : vector<32x256xf32>
    %350 = arith.addf %343, %349 : vector<32x256xf32>
    %c241_i32_132 = arith.constant 241 : i32
    %351 = tpu.dynamic_rotate %312 by %c241_i32_132 dim 1 : vector<32x256xf32>, i32 -> vector<32x256xf32>
    %c0_133 = arith.constant 0 : index
    %c6_134 = arith.constant 6 : index
    %352 = vector.load %arg5[%c0_133, %c6_134] : memref<32x9xf32, #tpu.memory_space<vmem>>, vector<32x1xf32>
    %353 = vector.broadcast %352 : vector<32x1xf32> to vector<32x256xf32>
    %354 = arith.mulf %351, %353 : vector<32x256xf32>
    %355 = vector.broadcast %138 : vector<1x256xf32> to vector<32x256xf32>
    %356 = arith.mulf %354, %355 : vector<32x256xf32>
    %357 = arith.addf %350, %356 : vector<32x256xf32>
    %c240_i32_135 = arith.constant 240 : i32
    %358 = tpu.dynamic_rotate %312 by %c240_i32_135 dim 1 : vector<32x256xf32>, i32 -> vector<32x256xf32>
    %c0_136 = arith.constant 0 : index
    %c7_137 = arith.constant 7 : index
    %359 = vector.load %arg5[%c0_136, %c7_137] : memref<32x9xf32, #tpu.memory_space<vmem>>, vector<32x1xf32>
    %360 = vector.broadcast %359 : vector<32x1xf32> to vector<32x256xf32>
    %361 = arith.mulf %358, %360 : vector<32x256xf32>
    %362 = vector.broadcast %160 : vector<1x256xf32> to vector<32x256xf32>
    %363 = arith.mulf %361, %362 : vector<32x256xf32>
    %364 = arith.addf %357, %363 : vector<32x256xf32>
    %c239_i32_138 = arith.constant 239 : i32
    %365 = tpu.dynamic_rotate %312 by %c239_i32_138 dim 1 : vector<32x256xf32>, i32 -> vector<32x256xf32>
    %c0_139 = arith.constant 0 : index
    %c8_140 = arith.constant 8 : index
    %366 = vector.load %arg5[%c0_139, %c8_140] : memref<32x9xf32, #tpu.memory_space<vmem>>, vector<32x1xf32>
    %367 = vector.broadcast %366 : vector<32x1xf32> to vector<32x256xf32>
    %368 = arith.mulf %365, %367 : vector<32x256xf32>
    %369 = vector.broadcast %182 : vector<1x256xf32> to vector<32x256xf32>
    %370 = arith.mulf %368, %369 : vector<32x256xf32>
    %371 = arith.addf %364, %370 : vector<32x256xf32>
    %c0_141 = arith.constant 0 : index
    %c0_142 = arith.constant 0 : index
    %372 = vector.load %arg6[%c0_141, %c0_142] : memref<32x1xf32, #tpu.memory_space<vmem>>, vector<32x1xf32>
    %373 = vector.broadcast %372 : vector<32x1xf32> to vector<32x256xf32>
    %374 = arith.addf %371, %373 : vector<32x256xf32>
    %375 = arith.negf %374 : vector<32x256xf32>
    %376 = math.exp %375 : vector<32x256xf32>
    %cst_143 = arith.constant 1.000000e+00 : f32
    %377 = vector.broadcast %cst_143 : f32 to vector<32x256xf32>
    %378 = arith.addf %377, %376 : vector<32x256xf32>
    %379 = arith.divf %377, %378 : vector<32x256xf32>
    %380 = arith.mulf %374, %379 : vector<32x256xf32>
    %cst_144 = arith.constant dense<0.000000e+00> : vector<32xf32>
    %381 = vector.multi_reduction <add>, %380, %cst_144 [1] : vector<32x256xf32> to vector<32xf32>
    %382 = vector.shape_cast %381 : vector<32xf32> to vector<32x1xf32>
    %cst_145 = arith.constant 3.906250e-03 : f32
    %383 = vector.broadcast %cst_145 : f32 to vector<32x1xf32>
    %384 = arith.mulf %382, %383 : vector<32x1xf32>
    %c0_146 = arith.constant 0 : index
    %c0_147 = arith.constant 0 : index
    %385 = vector.load %arg7[%c0_146, %c0_147] : memref<32x2xf32, #tpu.memory_space<vmem>>, vector<32x2xf32>
    %386 = vector.broadcast %384 : vector<32x1xf32> to vector<32x2xf32>
    %387 = arith.mulf %386, %385 : vector<32x2xf32>
    %cst_148 = arith.constant dense<0.000000e+00> : vector<2xf32>
    %388 = vector.multi_reduction <add>, %387, %cst_148 [0] : vector<32x2xf32> to vector<2xf32>
    %389 = vector.shape_cast %388 : vector<2xf32> to vector<1x2xf32>
    %390 = arith.negf %389 : vector<1x2xf32>
    %391 = math.exp %390 : vector<1x2xf32>
    %cst_149 = arith.constant 1.000000e+00 : f32
    %392 = vector.broadcast %cst_149 : f32 to vector<1x2xf32>
    %393 = arith.addf %392, %391 : vector<1x2xf32>
    %394 = arith.divf %392, %393 : vector<1x2xf32>
    %395 = arith.mulf %389, %394 : vector<1x2xf32>
    %c0_150 = arith.constant 0 : index
    %c0_151 = arith.constant 0 : index
    %396 = vector.load %arg8[%c0_150, %c0_151] : memref<32x2xf32, #tpu.memory_space<vmem>>, vector<32x2xf32>
    %397 = vector.broadcast %395 : vector<1x2xf32> to vector<32x2xf32>
    %398 = arith.mulf %396, %397 : vector<32x2xf32>
    %cst_152 = arith.constant dense<0.000000e+00> : vector<32xf32>
    %399 = vector.multi_reduction <add>, %398, %cst_152 [1] : vector<32x2xf32> to vector<32xf32>
    %400 = vector.shape_cast %399 : vector<32xf32> to vector<32x1xf32>
    %401 = arith.negf %400 : vector<32x1xf32>
    %402 = math.exp %401 : vector<32x1xf32>
    %cst_153 = arith.constant 1.000000e+00 : f32
    %403 = vector.broadcast %cst_153 : f32 to vector<32x1xf32>
    %404 = arith.addf %403, %402 : vector<32x1xf32>
    %405 = arith.divf %403, %404 : vector<32x1xf32>
    %406 = vector.broadcast %405 : vector<32x1xf32> to vector<32x256xf32>
    %407 = arith.mulf %380, %406 : vector<32x256xf32>
    %c0_154 = arith.constant 0 : index
    %c0_155 = arith.constant 0 : index
    %408 = vector.load %arg9[%c0_154, %c0_155] : memref<8x32xf32, #tpu.memory_space<vmem>>, vector<8x32xf32>
    %cst_156 = arith.constant dense<0.000000e+00> : vector<8x256xf32>
    %409 = tpu.matmul %408, %407, %cst_156 {dimension_numbers = #tpu.dot_dimension_numbers<[1], [0], [0], [1], [0, 0, 1, 1], [], []>} : vector<8x32xf32>, vector<32x256xf32>, vector<8x256xf32> -> vector<8x256xf32>
    %c0_157 = arith.constant 0 : index
    %c0_158 = arith.constant 0 : index
    %410 = vector.load %arg10[%c0_157, %c0_158] : memref<8x1xf32, #tpu.memory_space<vmem>>, vector<8x1xf32>
    %411 = vector.broadcast %410 : vector<8x1xf32> to vector<8x256xf32>
    %412 = arith.addf %409, %411 : vector<8x256xf32>
    %413 = arith.addf %412, %301 : vector<8x256xf32>
    %c1_159 = arith.constant 1 : index
    %c0_160 = arith.constant 0 : index
    %c0_161 = arith.constant 0 : index
    %414 = vector.load %arg11[%c1_159, %c0_160, %c0_161] : memref<2x8x256xf32, #tpu.memory_space<vmem>>, vector<1x8x256xf32>
    %415 = vector.shape_cast %414 : vector<1x8x256xf32> to vector<8x256xf32>
    %416 = vector.shape_cast %413 : vector<8x256xf32> to vector<1x8x256xf32>
    tpu.vector_store %arg11[%c1_159, %c0_160, %c0_161], %416 {strides = array<i32>} : memref<2x8x256xf32, #tpu.memory_space<vmem>>, vector<1x8x256xf32>,
    return
  }
  func.func @transform_0(%arg0: i32) -> (i32, i32, i32) {
    %c0_i32 = arith.constant 0 : i32
    %c0_i32_0 = arith.constant 0 : i32
    %c0_i32_1 = arith.constant 0 : i32
    return %arg0, %c0_i32, %c0_i32_0 : i32, i32, i32
  }
  func.func @transform_1(%arg0: i32) -> (i32, i32) {
    %c0_i32 = arith.constant 0 : i32
    %c0_i32_0 = arith.constant 0 : i32
    %c0_i32_1 = arith.constant 0 : i32
    return %c0_i32, %c0_i32_0 : i32, i32
  }
  func.func @transform_2(%arg0: i32) -> (i32, i32) {
    %c0_i32 = arith.constant 0 : i32
    %c0_i32_0 = arith.constant 0 : i32
    %c0_i32_1 = arith.constant 0 : i32
    return %c0_i32, %c0_i32_0 : i32, i32
  }
  func.func @transform_3(%arg0: i32) -> (i32, i32) {
    %c0_i32 = arith.constant 0 : i32
    %c0_i32_0 = arith.constant 0 : i32
    %c0_i32_1 = arith.constant 0 : i32
    return %c0_i32, %c0_i32_0 : i32, i32
  }
  func.func @transform_4(%arg0: i32) -> (i32, i32) {
    %c0_i32 = arith.constant 0 : i32
    %c0_i32_0 = arith.constant 0 : i32
    %c0_i32_1 = arith.constant 0 : i32
    return %c0_i32, %c0_i32_0 : i32, i32
  }
  func.func @transform_5(%arg0: i32) -> (i32, i32) {
    %c0_i32 = arith.constant 0 : i32
    %c0_i32_0 = arith.constant 0 : i32
    %c0_i32_1 = arith.constant 0 : i32
    return %c0_i32, %c0_i32_0 : i32, i32
  }
  func.func @transform_6(%arg0: i32) -> (i32, i32) {
    %c0_i32 = arith.constant 0 : i32
    %c0_i32_0 = arith.constant 0 : i32
    %c0_i32_1 = arith.constant 0 : i32
    return %c0_i32, %c0_i32_0 : i32, i32
  }
  func.func @transform_7(%arg0: i32) -> (i32, i32) {
    %c0_i32 = arith.constant 0 : i32
    %c0_i32_0 = arith.constant 0 : i32
    %c0_i32_1 = arith.constant 0 : i32
    return %c0_i32, %c0_i32_0 : i32, i32
  }
  func.func @transform_8(%arg0: i32) -> (i32, i32) {
    %c0_i32 = arith.constant 0 : i32
    %c0_i32_0 = arith.constant 0 : i32
    %c0_i32_1 = arith.constant 0 : i32
    return %c0_i32, %c0_i32_0 : i32, i32
  }
  func.func @transform_9(%arg0: i32) -> (i32, i32) {
    %c0_i32 = arith.constant 0 : i32
    %c0_i32_0 = arith.constant 0 : i32
    %c0_i32_1 = arith.constant 0 : i32
    return %c0_i32, %c0_i32_0 : i32, i32
  }
  func.func @transform_10(%arg0: i32) -> (i32, i32, i32) {
    %c0_i32 = arith.constant 0 : i32
    %c0_i32_0 = arith.constant 0 : i32
    %c0_i32_1 = arith.constant 0 : i32
    return %arg0, %c0_i32, %c0_i32_0 : i32, i32, i32
  }
}

</mosaic_0001>

<llo_original>
// kernel: tpu_custom_call.1
$region0: #{tpu_custom_call.1}
  #allocation0 [shape = 'u32[]', space=smem, size = 0x4, offset = 0x4, fixed_abs, tag = 'smem constant byte address 0x4 - core index']
  #allocation1 [shape = 'u32[144,128]{1,0:T(1,128)}', space=vmem, size = 0x12000, scoped, tag = 'internal scratch']
  %s0 = inlined_call_operand.vmem [shape: f32[2,8,256], index: 0, kind: input, shape index: {}]
  %s1 = inlined_call_operand.vmem [shape: s32[2,256], index: 1, kind: input, shape index: {}]
  %s2 = inlined_call_operand.vmem [shape: f32[32,8], index: 2, kind: input, shape index: {}]
  %s3 = inlined_call_operand.vmem [shape: f32[32,1], index: 3, kind: input, shape index: {}]
  %s4 = inlined_call_operand.vmem [shape: f32[32,9], index: 4, kind: input, shape index: {}]
  %s5 = inlined_call_operand.vmem [shape: f32[32,1], index: 5, kind: input, shape index: {}]
  %s6 = inlined_call_operand.vmem [shape: f32[32,2], index: 6, kind: input, shape index: {}]
  %s7 = inlined_call_operand.vmem [shape: f32[32,2], index: 7, kind: input, shape index: {}]
  %s8 = inlined_call_operand.vmem [shape: f32[8,32], index: 8, kind: input, shape index: {}]
  %s9 = inlined_call_operand.vmem [shape: f32[8,1], index: 9, kind: input, shape index: {}]
  %s10 = inlined_call_operand.hbm [shape: f32[2,8,256], index: 10, kind: output, shape index: {}]
  %s11 = sld [smem:[#allocation0]]
  $region50: #{tpu_custom_call.1} parent=0
    _
  %s13 = ssub.s32 1, %s11
  %s14 = scalar_select 0, %s13, %s11
  $region1: #{tpu_custom_call.1} parent=0
    #allocation2 [shape = 'u8[16384]{0}', space=vmem, size = 0x4000, scoped, tag = 'output window, operand 0, single buffered']
    #allocation3 [shape = 's32[1]{0}', space=sflag, size = 0x4, scoped, tag = 'scoped memory for tpu_custom_call.1']
    %15 = vsyncpa [#allocation3], 0
    // Predicated region
    $region2: #{tpu_custom_call.1} parent=1 // pred_check
      _
    $region3: #{tpu_custom_call.1} parent=1 // pred_check_branch
      %17 = sbr.rel (0) target = $region5
    $region4: #{tpu_custom_call.1} parent=1 // pred_region
      _
    $region5: #{tpu_custom_call.1} parent=1 // pred_fallthru
      _
    // Predicated region
    $region6: #{tpu_custom_call.1} parent=1 // pred_check
      _
    $region7: #{tpu_custom_call.1} parent=1 // pred_check_branch
      %19 = sbr.rel (0) target = $region9
    $region8: #{tpu_custom_call.1} parent=1 // pred_region
      _
    $region9: #{tpu_custom_call.1} parent=1 // pred_fallthru
      _
    // Predicated region
    $region10: #{tpu_custom_call.1} parent=1 // pred_check
      _
    $region11: #{tpu_custom_call.1} parent=1 // pred_check_branch
      %21 = sbr.rel (0) target = $region13
    $region12: #{tpu_custom_call.1} parent=1 // pred_region
      _
    $region13: #{tpu_custom_call.1} parent=1 // pred_fallthru
      _
    // Predicated region
    $region14: #{tpu_custom_call.1} parent=1 // pred_check
      _
    $region15: #{tpu_custom_call.1} parent=1 // pred_check_branch
      %23 = sbr.rel (0) target = $region17
    $region16: #{tpu_custom_call.1} parent=1 // pred_region
      _
    $region17: #{tpu_custom_call.1} parent=1 // pred_fallthru
      _
    // Predicated region
    $region18: #{tpu_custom_call.1} parent=1 // pred_check
      _
    $region19: #{tpu_custom_call.1} parent=1 // pred_check_branch
      %25 = sbr.rel (0) target = $region21
    $region20: #{tpu_custom_call.1} parent=1 // pred_region
      _
    $region21: #{tpu_custom_call.1} parent=1 // pred_fallthru
      _
    // Predicated region
    $region22: #{tpu_custom_call.1} parent=1 // pred_check
      _
    $region23: #{tpu_custom_call.1} parent=1 // pred_check_branch
      %27 = sbr.rel (0) target = $region25
    $region24: #{tpu_custom_call.1} parent=1 // pred_region
      _
    $region25: #{tpu_custom_call.1} parent=1 // pred_fallthru
      _
    // Predicated region
    $region26: #{tpu_custom_call.1} parent=1 // pred_check
      _
    $region27: #{tpu_custom_call.1} parent=1 // pred_check_branch
      %29 = sbr.rel (0) target = $region29
    $region28: #{tpu_custom_call.1} parent=1 // pred_region
      _
    $region29: #{tpu_custom_call.1} parent=1 // pred_fallthru
      _
    // Predicated region
    $region30: #{tpu_custom_call.1} parent=1 // pred_check
      _
    $region31: #{tpu_custom_call.1} parent=1 // pred_check_branch
      %31 = sbr.rel (0) target = $region33
    $region32: #{tpu_custom_call.1} parent=1 // pred_region
      _
    $region33: #{tpu_custom_call.1} parent=1 // pred_fallthru
      _
    // Predicated region
    $region34: #{tpu_custom_call.1} parent=1 // pred_check
      _
    $region35: #{tpu_custom_call.1} parent=1 // pred_check_branch
      %33 = sbr.rel (0) target = $region37
    $region36: #{tpu_custom_call.1} parent=1 // pred_region
      _
    $region37: #{tpu_custom_call.1} parent=1 // pred_fallthru
      _
    // Predicated region
    $region38: #{tpu_custom_call.1} parent=1 // pred_check
      _
    $region39: #{tpu_custom_call.1} parent=1 // pred_check_branch
      %35 = sbr.rel (0) target = $region41
    $region40: #{tpu_custom_call.1} parent=1 // pred_region
      _
    $region41: #{tpu_custom_call.1} parent=1 // pred_fallthru
      _
    %v36 = vld [vmem:[%s1] ss:$2 sm:$0x3]
    %s37 = scalar_lea.vmem %s1, 1
    %v38 = vld [vmem:[%s37] ss:$2 sm:$0x3]
    %vm39 = vcmp.lt.s32.totalorder %v36, 16
    %vm40 = vcmp.lt.s32.totalorder %v38, 16
    %vm41 = vmand %vm39, %vm40
    %v42 = vadd.s32 %v36, 4294967295
    %vm43 = vcmp.ge.s32.totalorder %v42, 0
    %vm44 = vmand %vm41, %vm43
    %vm45 = vcmp.lt.s32.totalorder %v42, 16
    %vm46 = vmand %vm44, %vm45
    %v47 = vadd.s32 %v38, 4294967295
    %vm48 = vcmp.ge.s32.totalorder %v47, 0
    %vm49 = vmand %vm46, %vm48
    %vm50 = vcmp.lt.s32.totalorder %v47, 16
    %vm51 = vmand %vm49, %vm50
    %v52 = vsel %vm51, 1, 0
    %v53 = vcvt.s32.f32 %v52
    %vm54 = vcmp.ge.s32.totalorder %v38, 0
    %vm55 = vmand %vm46, %vm54
    %vm56 = vmand %vm55, %vm40
    %v57 = vsel %vm56, 1, 0
    %v58 = vcvt.s32.f32 %v57
    %v59 = vadd.s32 %v38, 1
    %vm60 = vcmp.ge.s32.totalorder %v59, 0
    %vm61 = vmand %vm46, %vm60
    %vm62 = vcmp.lt.s32.totalorder %v59, 16
    %vm63 = vmand %vm61, %vm62
    %v64 = vsel %vm63, 1, 0
    %v65 = vcvt.s32.f32 %v64
    %vm66 = vcmp.ge.s32.totalorder %v36, 0
    %vm67 = vmand %vm41, %vm66
    %vm68 = vmand %vm67, %vm39
    %vm69 = vmand %vm68, %vm48
    %vm70 = vmand %vm69, %vm50
    %v71 = vsel %vm70, 1, 0
    %v72 = vcvt.s32.f32 %v71
    %vm73 = vmand %vm68, %vm60
    %vm74 = vmand %vm73, %vm62
    %v75 = vsel %vm74, 1, 0
    %v76 = vcvt.s32.f32 %v75
    %v77 = vadd.s32 %v36, 1
    %vm78 = vcmp.ge.s32.totalorder %v77, 0
    %vm79 = vmand %vm41, %vm78
    %vm80 = vcmp.lt.s32.totalorder %v77, 16
    %vm81 = vmand %vm79, %vm80
    %vm82 = vmand %vm81, %vm48
    %vm83 = vmand %vm82, %vm50
    %v84 = vsel %vm83, 1, 0
    %v85 = vcvt.s32.f32 %v84
    %vm86 = vmand %vm81, %vm54
    %vm87 = vmand %vm86, %vm40
    %v88 = vsel %vm87, 1, 0
    %v89 = vcvt.s32.f32 %v88
    %vm90 = vmand %vm81, %vm60
    %vm91 = vmand %vm90, %vm62
    %v92 = vsel %vm91, 1, 0
    %v93 = vcvt.s32.f32 %v92
    %v94 = vld [vmem:[%s0] sm:$0xff]
    %v95 = vld [vmem:[%s0 + $0x8] sm:$0xff]
    %v96 = vld [vmem:[%s2] sm:$0xff]
    %v97 = vld [vmem:[%s2 + $0x8] sm:$0xff]
    %v98 = vld [vmem:[%s2 + $0x10] sm:$0xff]
    %v99 = vld [vmem:[%s2 + $0x18] sm:$0xff]
    %v100 = vld [vmem:[%s3] sm:$0xff]
    %v101 = vld [vmem:[%s3 + $0x8] sm:$0xff]
    %v102 = vld [vmem:[%s3 + $0x10] sm:$0xff]
    %v103 = vld [vmem:[%s3 + $0x18] sm:$0xff]
    %105 = vset.pattern.permute.xlu0 0
    %106 = vperm.xlu0 %105, %v100
    %v107 = vpop.permute.xlu0 %106
    %110 = vset.pattern.permute.xlu0 0
    %111 = vperm.xlu0 %110, %v101
    %v112 = vpop.permute.xlu0 %111
    %115 = vset.pattern.permute.xlu0 0
    %116 = vperm.xlu0 %115, %v102
    %v117 = vpop.permute.xlu0 %116
    %120 = vset.pattern.permute.xlu0 0
    %121 = vperm.xlu0 %120, %v103
    %v122 = vpop.permute.xlu0 %121
    %vm124 = vcmask 64512
    %v126 = vsel %vm124, %v96, 0
    %v129 = vsel %vm124, %v97, 0
    %v132 = vsel %vm124, %v98, 0
    %v135 = vsel %vm124, %v99, 0
    %137 = vmatprep.subr.mxu0 0.0
    %138 = vmatpush1.msra.mxu0 0.0
    %139 = vmatprep.subr.mxu0 0.0
    %140 = vmatpush1.msra.mxu0 0.0
    %141 = vmatprep.subr.mxu0 0.0
    %142 = vmatpush1.msra.mxu0 0.0
    %143 = vmatprep.subr.mxu0 0.0
    %144 = vmatpush1.msra.mxu0 0.0
    %145 = vmatprep.subr.mxu0 0.0
    %146 = vmatpush1.msra.mxu0 0.0
    %147 = vmatprep.subr.mxu0 0.0
    %148 = vmatpush1.msra.mxu0 0.0
    %149 = vmatprep.subr.mxu0 0.0
    %150 = vmatpush1.msra.mxu0 0.0
    %151 = vmatprep.subr.mxu0 0.0
    %152 = vmatpush1.msra.mxu0 0.0
    %153 = vmatprep.subr.mxu0 0.0
    %154 = vmatpush1.msra.mxu0 0.0
    %155 = vmatprep.subr.mxu0 0.0
    %156 = vmatpush1.msra.mxu0 0.0
    %157 = vmatprep.subr.mxu0 0.0
    %158 = vmatpush1.msra.mxu0 0.0
    %159 = vmatprep.subr.mxu0 0.0
    %160 = vmatpush1.msra.mxu0 0.0
    %161 = vmatprep.subr.mxu0 0.0
    %162 = vmatpush1.msra.mxu0 0.0
    %163 = vmatprep.subr.mxu0 0.0
    %164 = vmatpush1.msra.mxu0 0.0
    %165 = vmatprep.subr.mxu0 0.0
    %166 = vmatpush1.msra.mxu0 0.0
    %167 = vmatprep.subr.mxu0 %v95
    %168 = vmatpush1.msra.mxu0 %v94
    %169 = vmatprep.subr.mxu0 0.0
    %170 = vmatpush2.msra.mxu0 0.0
    %171 = vmatprep.subr.mxu0 0.0
    %172 = vmatpush2.msra.mxu0 0.0
    %173 = vmatprep.subr.mxu0 0.0
    %174 = vmatpush2.msra.mxu0 0.0
    %175 = vmatprep.subr.mxu0 0.0
    %176 = vmatpush2.msra.mxu0 0.0
    %177 = vmatprep.subr.mxu0 0.0
    %178 = vmatpush2.msra.mxu0 0.0
    %179 = vmatprep.subr.mxu0 0.0
    %180 = vmatpush2.msra.mxu0 0.0
    %181 = vmatprep.subr.mxu0 0.0
    %182 = vmatpush2.msra.mxu0 0.0
    %183 = vmatprep.subr.mxu0 0.0
    %184 = vmatpush2.msra.mxu0 0.0
    %185 = vmatprep.subr.mxu0 0.0
    %186 = vmatpush2.msra.mxu0 0.0
    %187 = vmatprep.subr.mxu0 0.0
    %188 = vmatpush2.msra.mxu0 0.0
    %189 = vmatprep.subr.mxu0 0.0
    %190 = vmatpush2.msra.mxu0 0.0
    %191 = vmatprep.subr.mxu0 0.0
    %192 = vmatpush2.msra.mxu0 0.0
    %193 = vmatprep.subr.mxu0 0.0
    %194 = vmatpush2.msra.mxu0 0.0
    %195 = vmatprep.subr.mxu0 0.0
    %196 = vmatpush2.msra.mxu0 0.0
    %197 = vmatprep.subr.mxu0 0.0
    %198 = vmatpush2.msra.mxu0 0.0
    %199 = vmatprep.subr.mxu0 0.0
    %200 = vmatpush2.msra.mxu0 0.0
    %201 = vmatprep.mubr.f32.mxu0 0.0
    %202 = vmatmul.mubr.f32.gmra.mxu0 %v126
    %v203 = vpop.f32.mrf.mxu0
    %v204 = vadd.f32 %v107, %v203
    %v205 = vpop.f32.mrf.mxu0
    %v206 = vadd.f32 %v107, %v205
    %207 = vmatprep.mubr.f32.mxu0 0.0
    %208 = vmatmul.mubr.f32.gmra.mxu0 %v129
    %v209 = vpop.f32.mrf.mxu0
    %v210 = vadd.f32 %v112, %v209
    %v211 = vpop.f32.mrf.mxu0
    %v212 = vadd.f32 %v112, %v211
    %213 = vmatprep.mubr.f32.mxu0 0.0
    %214 = vmatmul.mubr.f32.gmra.mxu0 %v132
    %v215 = vpop.f32.mrf.mxu0
    %v216 = vadd.f32 %v117, %v215
    %v217 = vpop.f32.mrf.mxu0
    %v218 = vadd.f32 %v117, %v217
    %219 = vmatprep.mubr.f32.mxu0 0.0
    %220 = vmatmul.mubr.f32.gmra.mxu0 %v135
    %v221 = vpop.f32.mrf.mxu0
    %v222 = vadd.f32 %v122, %v221
    %v223 = vpop.f32.mrf.mxu0
    %v224 = vadd.f32 %v122, %v223
    %225 = vdwg.mxu0
    %v226 = vxor.u32 %v204, 2147483648
    %v227 = vxor.u32 %v206, 2147483648
    %v228 = vxor.u32 %v210, 2147483648
    %v229 = vxor.u32 %v212, 2147483648
    %v230 = vxor.u32 %v216, 2147483648
    %v231 = vxor.u32 %v218, 2147483648
    %v232 = vxor.u32 %v222, 2147483648
    %v233 = vxor.u32 %v224, 2147483648
    %v234 = vmul.f32 %v226, 1.442695
    %v235 = vpow.pop %v234
    %v236 = vmul.f32 %v227, 1.442695
    %v237 = vpow.pop %v236
    %v238 = vmul.f32 %v228, 1.442695
    %v239 = vpow.pop %v238
    %v240 = vmul.f32 %v229, 1.442695
    %v241 = vpow.pop %v240
    %v242 = vmul.f32 %v230, 1.442695
    %v243 = vpow.pop %v242
    %v244 = vmul.f32 %v231, 1.442695
    %v245 = vpow.pop %v244
    %v246 = vmul.f32 %v232, 1.442695
    %v247 = vpow.pop %v246
    %v248 = vmul.f32 %v233, 1.442695
    %v249 = vpow.pop %v248
    %v250 = vadd.f32 %v235, 1.0
    %v251 = vadd.f32 %v237, 1.0
    %v252 = vadd.f32 %v239, 1.0
    %v253 = vadd.f32 %v241, 1.0
    %v254 = vadd.f32 %v243, 1.0
    %v255 = vadd.f32 %v245, 1.0
    %v256 = vadd.f32 %v247, 1.0
    %v257 = vadd.f32 %v249, 1.0
    %v258 = vrcp.pop %v250
    %v259 = vmul.f32 1.0, %v258
    %v260 = vrcp.pop %v251
    %v261 = vmul.f32 1.0, %v260
    %v262 = vrcp.pop %v252
    %v263 = vmul.f32 1.0, %v262
    %v264 = vrcp.pop %v253
    %v265 = vmul.f32 1.0, %v264
    %v266 = vrcp.pop %v254
    %v267 = vmul.f32 1.0, %v266
    %v268 = vrcp.pop %v255
    %v269 = vmul.f32 1.0, %v268
    %v270 = vrcp.pop %v256
    %v271 = vmul.f32 1.0, %v270
    %v272 = vrcp.pop %v257
    %v273 = vmul.f32 1.0, %v272
    %v274 = vmul.f32 %v204, %v259
    %v275 = vmul.f32 %v206, %v261
    %v276 = vmul.f32 %v210, %v263
    %v277 = vmul.f32 %v212, %v265
    %v278 = vmul.f32 %v216, %v267
    %v279 = vmul.f32 %v218, %v269
    %v280 = vmul.f32 %v222, %v271
    %v281 = vmul.f32 %v224, %v273
    %v282 = vld [vmem:[%s4] sm:$0xff]
    %v283 = vld [vmem:[%s4 + $0x8] sm:$0xff]
    %v284 = vld [vmem:[%s4 + $0x10] sm:$0xff]
    %v285 = vld [vmem:[%s4 + $0x18] sm:$0xff]
    %287 = vset.pattern.permute.xlu0 4
    %288 = vperm.xlu0 %287, %v282
    %v289 = vpop.permute.xlu0 %288
    %292 = vset.pattern.permute.xlu0 4
    %293 = vperm.xlu0 %292, %v283
    %v294 = vpop.permute.xlu0 %293
    %297 = vset.pattern.permute.xlu0 4
    %298 = vperm.xlu0 %297, %v284
    %v299 = vpop.permute.xlu0 %298
    %302 = vset.pattern.permute.xlu0 4
    %303 = vperm.xlu0 %302, %v285
    %v304 = vpop.permute.xlu0 %303
    %v306 = vmul.f32 %v274, %v289
    %v307 = vmul.f32 %v275, %v289
    %v308 = vmul.f32 %v276, %v294
    %v309 = vmul.f32 %v277, %v294
    %v310 = vmul.f32 %v278, %v299
    %v311 = vmul.f32 %v279, %v299
    %v312 = vmul.f32 %v280, %v304
    %v313 = vmul.f32 %v281, %v304
    %314 = vrot.lane.b32.xlu0 %v274, 17
    %v315 = vpop.permute.xlu0 %314
    %316 = vrot.lane.b32.xlu0 %v276, 17
    %v317 = vpop.permute.xlu0 %316
    %318 = vrot.lane.b32.xlu0 %v278, 17
    %v319 = vpop.permute.xlu0 %318
    %320 = vrot.lane.b32.xlu0 %v280, 17
    %v321 = vpop.permute.xlu0 %320
    %322 = vrot.lane.b32.xlu0 %v275, 17
    %v323 = vpop.permute.xlu0 %322
    %324 = vrot.lane.b32.xlu0 %v277, 17
    %v325 = vpop.permute.xlu0 %324
    %326 = vrot.lane.b32.xlu0 %v279, 17
    %v327 = vpop.permute.xlu0 %326
    %328 = vrot.lane.b32.xlu0 %v281, 17
    %v329 = vpop.permute.xlu0 %328
    %v330 = vlaneseq
    %v331 = vand.u32 %v330, 127
    %vm332 = vcmp.lt.s32.totalorder %v331, 17
    %v333 = vsel %vm332, %v315, %v323
    %v334 = vsel %vm332, %v317, %v325
    %v335 = vsel %vm332, %v319, %v327
    %v336 = vsel %vm332, %v321, %v329
    %v337 = vsel %vm332, %v323, %v315
    %v338 = vsel %vm332, %v325, %v317
    %v339 = vsel %vm332, %v327, %v319
    %v340 = vsel %vm332, %v329, %v321
    %341 = vset.pattern.permute.xlu0 0
    %342 = vperm.xlu0 %341, %v282
    %v343 = vpop.permute.xlu0 %342
    %345 = vset.pattern.permute.xlu0 0
    %346 = vperm.xlu0 %345, %v283
    %v347 = vpop.permute.xlu0 %346
    %349 = vset.pattern.permute.xlu0 0
    %350 = vperm.xlu0 %349, %v284
    %v351 = vpop.permute.xlu0 %350
    %353 = vset.pattern.permute.xlu0 0
    %354 = vperm.xlu0 %353, %v285
    %v355 = vpop.permute.xlu0 %354
    %v357 = vmul.f32 %v337, %v343
    %v358 = vmul.f32 %v333, %v343
    %v359 = vmul.f32 %v338, %v347
    %v360 = vmul.f32 %v334, %v347
    %v361 = vmul.f32 %v339, %v351
    %v362 = vmul.f32 %v335, %v351
    %v363 = vmul.f32 %v340, %v355
    %v364 = vmul.f32 %v336, %v355
    %v366 = vlaneseq
    %v367 = vshrl.u32 %v366, 7
    %v368 = vsub.s32 0, %v367
    %v369 = vrot.slane %v53, %v368
    %v370 = vlaneseq
    %v371 = vshrl.u32 %v370, 7
    %v372 = vsub.s32 1, %v371
    %v373 = vrot.slane %v53, %v372
    %v376 = vmul.f32 %v357, %v369
    %v377 = vmul.f32 %v358, %v373
    %v378 = vmul.f32 %v359, %v369
    %v379 = vmul.f32 %v360, %v373
    %v380 = vmul.f32 %v361, %v369
    %v381 = vmul.f32 %v362, %v373
    %v382 = vmul.f32 %v363, %v369
    %v383 = vmul.f32 %v364, %v373
    %v384 = vadd.f32 %v306, %v376
    %v385 = vadd.f32 %v307, %v377
    %v386 = vadd.f32 %v308, %v378
    %v387 = vadd.f32 %v309, %v379
    %v388 = vadd.f32 %v310, %v380
    %v389 = vadd.f32 %v311, %v381
    %v390 = vadd.f32 %v312, %v382
    %v391 = vadd.f32 %v313, %v383
    %392 = vrot.lane.b32.xlu0 %v274, 16
    %v393 = vpop.permute.xlu0 %392
    %394 = vrot.lane.b32.xlu0 %v276, 16
    %v395 = vpop.permute.xlu0 %394
    %396 = vrot.lane.b32.xlu0 %v278, 16
    %v397 = vpop.permute.xlu0 %396
    %398 = vrot.lane.b32.xlu0 %v280, 16
    %v399 = vpop.permute.xlu0 %398
    %400 = vrot.lane.b32.xlu0 %v275, 16
    %v401 = vpop.permute.xlu0 %400
    %402 = vrot.lane.b32.xlu0 %v277, 16
    %v403 = vpop.permute.xlu0 %402
    %404 = vrot.lane.b32.xlu0 %v279, 16
    %v405 = vpop.permute.xlu0 %404
    %406 = vrot.lane.b32.xlu0 %v281, 16
    %v407 = vpop.permute.xlu0 %406
    %vm408 = vcmp.lt.s32.totalorder %v331, 16
    %v409 = vsel %vm408, %v393, %v401
    %v410 = vsel %vm408, %v395, %v403
    %v411 = vsel %vm408, %v397, %v405
    %v412 = vsel %vm408, %v399, %v407
    %v413 = vsel %vm408, %v401, %v393
    %v414 = vsel %vm408, %v403, %v395
    %v415 = vsel %vm408, %v405, %v397
    %v416 = vsel %vm408, %v407, %v399
    %417 = vset.pattern.permute.xlu0 1
    %418 = vperm.xlu0 %417, %v282
    %v419 = vpop.permute.xlu0 %418
    %421 = vset.pattern.permute.xlu0 1
    %422 = vperm.xlu0 %421, %v283
    %v423 = vpop.permute.xlu0 %422
    %425 = vset.pattern.permute.xlu0 1
    %426 = vperm.xlu0 %425, %v284
    %v427 = vpop.permute.xlu0 %426
    %429 = vset.pattern.permute.xlu0 1
    %430 = vperm.xlu0 %429, %v285
    %v431 = vpop.permute.xlu0 %430
    %v433 = vmul.f32 %v413, %v419
    %v434 = vmul.f32 %v409, %v419
    %v435 = vmul.f32 %v414, %v423
    %v436 = vmul.f32 %v410, %v423
    %v437 = vmul.f32 %v415, %v427
    %v438 = vmul.f32 %v411, %v427
    %v439 = vmul.f32 %v416, %v431
    %v440 = vmul.f32 %v412, %v431
    %v442 = vlaneseq
    %v443 = vshrl.u32 %v442, 7
    %v444 = vsub.s32 0, %v443
    %v445 = vrot.slane %v58, %v444
    %v446 = vlaneseq
    %v447 = vshrl.u32 %v446, 7
    %v448 = vsub.s32 1, %v447
    %v449 = vrot.slane %v58, %v448
    %v452 = vmul.f32 %v433, %v445
    %v453 = vmul.f32 %v434, %v449
    %v454 = vmul.f32 %v435, %v445
    %v455 = vmul.f32 %v436, %v449
    %v456 = vmul.f32 %v437, %v445
    %v457 = vmul.f32 %v438, %v449
    %v458 = vmul.f32 %v439, %v445
    %v459 = vmul.f32 %v440, %v449
    %v460 = vadd.f32 %v384, %v452
    %v461 = vadd.f32 %v385, %v453
    %v462 = vadd.f32 %v386, %v454
    %v463 = vadd.f32 %v387, %v455
    %v464 = vadd.f32 %v388, %v456
    %v465 = vadd.f32 %v389, %v457
    %v466 = vadd.f32 %v390, %v458
    %v467 = vadd.f32 %v391, %v459
    %468 = vrot.lane.b32.xlu0 %v274, 15
    %v469 = vpop.permute.xlu0 %468
    %470 = vrot.lane.b32.xlu0 %v276, 15
    %v471 = vpop.permute.xlu0 %470
    %472 = vrot.lane.b32.xlu0 %v278, 15
    %v473 = vpop.permute.xlu0 %472
    %474 = vrot.lane.b32.xlu0 %v280, 15
    %v475 = vpop.permute.xlu0 %474
    %476 = vrot.lane.b32.xlu0 %v275, 15
    %v477 = vpop.permute.xlu0 %476
    %478 = vrot.lane.b32.xlu0 %v277, 15
    %v479 = vpop.permute.xlu0 %478
    %480 = vrot.lane.b32.xlu0 %v279, 15
    %v481 = vpop.permute.xlu0 %480
    %482 = vrot.lane.b32.xlu0 %v281, 15
    %v483 = vpop.permute.xlu0 %482
    %vm484 = vcmp.lt.s32.totalorder %v331, 15
    %v485 = vsel %vm484, %v469, %v477
    %v486 = vsel %vm484, %v471, %v479
    %v487 = vsel %vm484, %v473, %v481
    %v488 = vsel %vm484, %v475, %v483
    %v489 = vsel %vm484, %v477, %v469
    %v490 = vsel %vm484, %v479, %v471
    %v491 = vsel %vm484, %v481, %v473
    %v492 = vsel %vm484, %v483, %v475
    %493 = vset.pattern.permute.xlu0 2
    %494 = vperm.xlu0 %493, %v282
    %v495 = vpop.permute.xlu0 %494
    %497 = vset.pattern.permute.xlu0 2
    %498 = vperm.xlu0 %497, %v283
    %v499 = vpop.permute.xlu0 %498
    %501 = vset.pattern.permute.xlu0 2
    %502 = vperm.xlu0 %501, %v284
    %v503 = vpop.permute.xlu0 %502
    %505 = vset.pattern.permute.xlu0 2
    %506 = vperm.xlu0 %505, %v285
    %v507 = vpop.permute.xlu0 %506
    %v509 = vmul.f32 %v489, %v495
    %v510 = vmul.f32 %v485, %v495
    %v511 = vmul.f32 %v490, %v499
    %v512 = vmul.f32 %v486, %v499
    %v513 = vmul.f32 %v491, %v503
    %v514 = vmul.f32 %v487, %v503
    %v515 = vmul.f32 %v492, %v507
    %v516 = vmul.f32 %v488, %v507
    %v518 = vlaneseq
    %v519 = vshrl.u32 %v518, 7
    %v520 = vsub.s32 0, %v519
    %v521 = vrot.slane %v65, %v520
    %v522 = vlaneseq
    %v523 = vshrl.u32 %v522, 7
    %v524 = vsub.s32 1, %v523
    %v525 = vrot.slane %v65, %v524
    %v528 = vmul.f32 %v509, %v521
    %v529 = vmul.f32 %v510, %v525
    %v530 = vmul.f32 %v511, %v521
    %v531 = vmul.f32 %v512, %v525
    %v532 = vmul.f32 %v513, %v521
    %v533 = vmul.f32 %v514, %v525
    %v534 = vmul.f32 %v515, %v521
    %v535 = vmul.f32 %v516, %v525
    %v536 = vadd.f32 %v460, %v528
    %v537 = vadd.f32 %v461, %v529
    %v538 = vadd.f32 %v462, %v530
    %v539 = vadd.f32 %v463, %v531
    %v540 = vadd.f32 %v464, %v532
    %v541 = vadd.f32 %v465, %v533
    %v542 = vadd.f32 %v466, %v534
    %v543 = vadd.f32 %v467, %v535
    %544 = vrot.lane.b32.xlu0 %v274, 1
    %v545 = vpop.permute.xlu0 %544
    %546 = vrot.lane.b32.xlu0 %v276, 1
    %v547 = vpop.permute.xlu0 %546
    %548 = vrot.lane.b32.xlu0 %v278, 1
    %v549 = vpop.permute.xlu0 %548
    %550 = vrot.lane.b32.xlu0 %v280, 1
    %v551 = vpop.permute.xlu0 %550
    %552 = vrot.lane.b32.xlu0 %v275, 1
    %v553 = vpop.permute.xlu0 %552
    %554 = vrot.lane.b32.xlu0 %v277, 1
    %v555 = vpop.permute.xlu0 %554
    %556 = vrot.lane.b32.xlu0 %v279, 1
    %v557 = vpop.permute.xlu0 %556
    %558 = vrot.lane.b32.xlu0 %v281, 1
    %v559 = vpop.permute.xlu0 %558
    %vm560 = vcmp.lt.s32.totalorder %v331, 1
    %v561 = vsel %vm560, %v545, %v553
    %v562 = vsel %vm560, %v547, %v555
    %v563 = vsel %vm560, %v549, %v557
    %v564 = vsel %vm560, %v551, %v559
    %v565 = vsel %vm560, %v553, %v545
    %v566 = vsel %vm560, %v555, %v547
    %v567 = vsel %vm560, %v557, %v549
    %v568 = vsel %vm560, %v559, %v551
    %569 = vset.pattern.permute.xlu0 3
    %570 = vperm.xlu0 %569, %v282
    %v571 = vpop.permute.xlu0 %570
    %573 = vset.pattern.permute.xlu0 3
    %574 = vperm.xlu0 %573, %v283
    %v575 = vpop.permute.xlu0 %574
    %577 = vset.pattern.permute.xlu0 3
    %578 = vperm.xlu0 %577, %v284
    %v579 = vpop.permute.xlu0 %578
    %581 = vset.pattern.permute.xlu0 3
    %582 = vperm.xlu0 %581, %v285
    %v583 = vpop.permute.xlu0 %582
    %v585 = vmul.f32 %v565, %v571
    %v586 = vmul.f32 %v561, %v571
    %v587 = vmul.f32 %v566, %v575
    %v588 = vmul.f32 %v562, %v575
    %v589 = vmul.f32 %v567, %v579
    %v590 = vmul.f32 %v563, %v579
    %v591 = vmul.f32 %v568, %v583
    %v592 = vmul.f32 %v564, %v583
    %v594 = vlaneseq
    %v595 = vshrl.u32 %v594, 7
    %v596 = vsub.s32 0, %v595
    %v597 = vrot.slane %v72, %v596
    %v598 = vlaneseq
    %v599 = vshrl.u32 %v598, 7
    %v600 = vsub.s32 1, %v599
    %v601 = vrot.slane %v72, %v600
    %v604 = vmul.f32 %v585, %v597
    %v605 = vmul.f32 %v586, %v601
    %v606 = vmul.f32 %v587, %v597
    %v607 = vmul.f32 %v588, %v601
    %v608 = vmul.f32 %v589, %v597
    %v609 = vmul.f32 %v590, %v601
    %v610 = vmul.f32 %v591, %v597
    %v611 = vmul.f32 %v592, %v601
    %v612 = vadd.f32 %v536, %v604
    %v613 = vadd.f32 %v537, %v605
    %v614 = vadd.f32 %v538, %v606
    %v615 = vadd.f32 %v539, %v607
    %v616 = vadd.f32 %v540, %v608
    %v617 = vadd.f32 %v541, %v609
    %v618 = vadd.f32 %v542, %v610
    %v619 = vadd.f32 %v543, %v611
    %620 = vrot.lane.b32.xlu0 %v274, 127
    %v621 = vpop.permute.xlu0 %620
    %622 = vrot.lane.b32.xlu0 %v276, 127
    %v623 = vpop.permute.xlu0 %622
    %624 = vrot.lane.b32.xlu0 %v278, 127
    %v625 = vpop.permute.xlu0 %624
    %626 = vrot.lane.b32.xlu0 %v280, 127
    %v627 = vpop.permute.xlu0 %626
    %628 = vrot.lane.b32.xlu0 %v275, 127
    %v629 = vpop.permute.xlu0 %628
    %630 = vrot.lane.b32.xlu0 %v277, 127
    %v631 = vpop.permute.xlu0 %630
    %632 = vrot.lane.b32.xlu0 %v279, 127
    %v633 = vpop.permute.xlu0 %632
    %634 = vrot.lane.b32.xlu0 %v281, 127
    %v635 = vpop.permute.xlu0 %634
    %vm636 = vcmp.lt.s32.totalorder %v331, 127
    %v637 = vsel %vm636, %v621, %v629
    %v638 = vsel %vm636, %v623, %v631
    %v639 = vsel %vm636, %v625, %v633
    %v640 = vsel %vm636, %v627, %v635
    %v641 = vsel %vm636, %v629, %v621
    %v642 = vsel %vm636, %v631, %v623
    %v643 = vsel %vm636, %v633, %v625
    %v644 = vsel %vm636, %v635, %v627
    %645 = vset.pattern.permute.xlu0 5
    %646 = vperm.xlu0 %645, %v282
    %v647 = vpop.permute.xlu0 %646
    %649 = vset.pattern.permute.xlu0 5
    %650 = vperm.xlu0 %649, %v283
    %v651 = vpop.permute.xlu0 %650
    %653 = vset.pattern.permute.xlu0 5
    %654 = vperm.xlu0 %653, %v284
    %v655 = vpop.permute.xlu0 %654
    %657 = vset.pattern.permute.xlu0 5
    %658 = vperm.xlu0 %657, %v285
    %v659 = vpop.permute.xlu0 %658
    %v661 = vmul.f32 %v637, %v647
    %v662 = vmul.f32 %v641, %v647
    %v663 = vmul.f32 %v638, %v651
    %v664 = vmul.f32 %v642, %v651
    %v665 = vmul.f32 %v639, %v655
    %v666 = vmul.f32 %v643, %v655
    %v667 = vmul.f32 %v640, %v659
    %v668 = vmul.f32 %v644, %v659
    %v670 = vlaneseq
    %v671 = vshrl.u32 %v670, 7
    %v672 = vsub.s32 0, %v671
    %v673 = vrot.slane %v76, %v672
    %v674 = vlaneseq
    %v675 = vshrl.u32 %v674, 7
    %v676 = vsub.s32 1, %v675
    %v677 = vrot.slane %v76, %v676
    %v680 = vmul.f32 %v661, %v673
    %v681 = vmul.f32 %v662, %v677
    %v682 = vmul.f32 %v663, %v673
    %v683 = vmul.f32 %v664, %v677
    %v684 = vmul.f32 %v665, %v673
    %v685 = vmul.f32 %v666, %v677
    %v686 = vmul.f32 %v667, %v673
    %v687 = vmul.f32 %v668, %v677
    %v688 = vadd.f32 %v612, %v680
    %v689 = vadd.f32 %v613, %v681
    %v690 = vadd.f32 %v614, %v682
    %v691 = vadd.f32 %v615, %v683
    %v692 = vadd.f32 %v616, %v684
    %v693 = vadd.f32 %v617, %v685
    %v694 = vadd.f32 %v618, %v686
    %v695 = vadd.f32 %v619, %v687
    %696 = vrot.lane.b32.xlu0 %v274, 113
    %v697 = vpop.permute.xlu0 %696
    %698 = vrot.lane.b32.xlu0 %v276, 113
    %v699 = vpop.permute.xlu0 %698
    %700 = vrot.lane.b32.xlu0 %v278, 113
    %v701 = vpop.permute.xlu0 %700
    %702 = vrot.lane.b32.xlu0 %v280, 113
    %v703 = vpop.permute.xlu0 %702
    %704 = vrot.lane.b32.xlu0 %v275, 113
    %v705 = vpop.permute.xlu0 %704
    %706 = vrot.lane.b32.xlu0 %v277, 113
    %v707 = vpop.permute.xlu0 %706
    %708 = vrot.lane.b32.xlu0 %v279, 113
    %v709 = vpop.permute.xlu0 %708
    %710 = vrot.lane.b32.xlu0 %v281, 113
    %v711 = vpop.permute.xlu0 %710
    %vm712 = vcmp.lt.s32.totalorder %v331, 113
    %v713 = vsel %vm712, %v697, %v705
    %v714 = vsel %vm712, %v699, %v707
    %v715 = vsel %vm712, %v701, %v709
    %v716 = vsel %vm712, %v703, %v711
    %v717 = vsel %vm712, %v705, %v697
    %v718 = vsel %vm712, %v707, %v699
    %v719 = vsel %vm712, %v709, %v701
    %v720 = vsel %vm712, %v711, %v703
    %721 = vset.pattern.permute.xlu0 6
    %722 = vperm.xlu0 %721, %v282
    %v723 = vpop.permute.xlu0 %722
    %725 = vset.pattern.permute.xlu0 6
    %726 = vperm.xlu0 %725, %v283
    %v727 = vpop.permute.xlu0 %726
    %729 = vset.pattern.permute.xlu0 6
    %730 = vperm.xlu0 %729, %v284
    %v731 = vpop.permute.xlu0 %730
    %733 = vset.pattern.permute.xlu0 6
    %734 = vperm.xlu0 %733, %v285
    %v735 = vpop.permute.xlu0 %734
    %v737 = vmul.f32 %v713, %v723
    %v738 = vmul.f32 %v717, %v723
    %v739 = vmul.f32 %v714, %v727
    %v740 = vmul.f32 %v718, %v727
    %v741 = vmul.f32 %v715, %v731
    %v742 = vmul.f32 %v719, %v731
    %v743 = vmul.f32 %v716, %v735
    %v744 = vmul.f32 %v720, %v735
    %v746 = vlaneseq
    %v747 = vshrl.u32 %v746, 7
    %v748 = vsub.s32 0, %v747
    %v749 = vrot.slane %v85, %v748
    %v750 = vlaneseq
    %v751 = vshrl.u32 %v750, 7
    %v752 = vsub.s32 1, %v751
    %v753 = vrot.slane %v85, %v752
    %v756 = vmul.f32 %v737, %v749
    %v757 = vmul.f32 %v738, %v753
    %v758 = vmul.f32 %v739, %v749
    %v759 = vmul.f32 %v740, %v753
    %v760 = vmul.f32 %v741, %v749
    %v761 = vmul.f32 %v742, %v753
    %v762 = vmul.f32 %v743, %v749
    %v763 = vmul.f32 %v744, %v753
    %v764 = vadd.f32 %v688, %v756
    %v765 = vadd.f32 %v689, %v757
    %v766 = vadd.f32 %v690, %v758
    %v767 = vadd.f32 %v691, %v759
    %v768 = vadd.f32 %v692, %v760
    %v769 = vadd.f32 %v693, %v761
    %v770 = vadd.f32 %v694, %v762
    %v771 = vadd.f32 %v695, %v763
    %772 = vrot.lane.b32.xlu0 %v274, 112
    %v773 = vpop.permute.xlu0 %772
    %774 = vrot.lane.b32.xlu0 %v276, 112
    %v775 = vpop.permute.xlu0 %774
    %776 = vrot.lane.b32.xlu0 %v278, 112
    %v777 = vpop.permute.xlu0 %776
    %778 = vrot.lane.b32.xlu0 %v280, 112
    %v779 = vpop.permute.xlu0 %778
    %780 = vrot.lane.b32.xlu0 %v275, 112
    %v781 = vpop.permute.xlu0 %780
    %782 = vrot.lane.b32.xlu0 %v277, 112
    %v783 = vpop.permute.xlu0 %782
    %784 = vrot.lane.b32.xlu0 %v279, 112
    %v785 = vpop.permute.xlu0 %784
    %786 = vrot.lane.b32.xlu0 %v281, 112
    %v787 = vpop.permute.xlu0 %786
    %vm788 = vcmp.lt.s32.totalorder %v331, 112
    %v789 = vsel %vm788, %v773, %v781
    %v790 = vsel %vm788, %v775, %v783
    %v791 = vsel %vm788, %v777, %v785
    %v792 = vsel %vm788, %v779, %v787
    %v793 = vsel %vm788, %v781, %v773
    %v794 = vsel %vm788, %v783, %v775
    %v795 = vsel %vm788, %v785, %v777
    %v796 = vsel %vm788, %v787, %v779
    %797 = vset.pattern.permute.xlu0 7
    %798 = vperm.xlu0 %797, %v282
    %v799 = vpop.permute.xlu0 %798
    %801 = vset.pattern.permute.xlu0 7
    %802 = vperm.xlu0 %801, %v283
    %v803 = vpop.permute.xlu0 %802
    %805 = vset.pattern.permute.xlu0 7
    %806 = vperm.xlu0 %805, %v284
    %v807 = vpop.permute.xlu0 %806
    %809 = vset.pattern.permute.xlu0 7
    %810 = vperm.xlu0 %809, %v285
    %v811 = vpop.permute.xlu0 %810
    %v813 = vmul.f32 %v789, %v799
    %v814 = vmul.f32 %v793, %v799
    %v815 = vmul.f32 %v790, %v803
    %v816 = vmul.f32 %v794, %v803
    %v817 = vmul.f32 %v791, %v807
    %v818 = vmul.f32 %v795, %v807
    %v819 = vmul.f32 %v792, %v811
    %v820 = vmul.f32 %v796, %v811
    %v822 = vlaneseq
    %v823 = vshrl.u32 %v822, 7
    %v824 = vsub.s32 0, %v823
    %v825 = vrot.slane %v89, %v824
    %v826 = vlaneseq
    %v827 = vshrl.u32 %v826, 7
    %v828 = vsub.s32 1, %v827
    %v829 = vrot.slane %v89, %v828
    %v832 = vmul.f32 %v813, %v825
    %v833 = vmul.f32 %v814, %v829
    %v834 = vmul.f32 %v815, %v825
    %v835 = vmul.f32 %v816, %v829
    %v836 = vmul.f32 %v817, %v825
    %v837 = vmul.f32 %v818, %v829
    %v838 = vmul.f32 %v819, %v825
    %v839 = vmul.f32 %v820, %v829
    %v840 = vadd.f32 %v764, %v832
    %v841 = vadd.f32 %v765, %v833
    %v842 = vadd.f32 %v766, %v834
    %v843 = vadd.f32 %v767, %v835
    %v844 = vadd.f32 %v768, %v836
    %v845 = vadd.f32 %v769, %v837
    %v846 = vadd.f32 %v770, %v838
    %v847 = vadd.f32 %v771, %v839
    %848 = vrot.lane.b32.xlu0 %v274, 111
    %v849 = vpop.permute.xlu0 %848
    %850 = vrot.lane.b32.xlu0 %v276, 111
    %v851 = vpop.permute.xlu0 %850
    %852 = vrot.lane.b32.xlu0 %v278, 111
    %v853 = vpop.permute.xlu0 %852
    %854 = vrot.lane.b32.xlu0 %v280, 111
    %v855 = vpop.permute.xlu0 %854
    %856 = vrot.lane.b32.xlu0 %v275, 111
    %v857 = vpop.permute.xlu0 %856
    %858 = vrot.lane.b32.xlu0 %v277, 111
    %v859 = vpop.permute.xlu0 %858
    %860 = vrot.lane.b32.xlu0 %v279, 111
    %v861 = vpop.permute.xlu0 %860
    %862 = vrot.lane.b32.xlu0 %v281, 111
    %v863 = vpop.permute.xlu0 %862
    %vm864 = vcmp.lt.s32.totalorder %v331, 111
    %v865 = vsel %vm864, %v849, %v857
    %v866 = vsel %vm864, %v851, %v859
    %v867 = vsel %vm864, %v853, %v861
    %v868 = vsel %vm864, %v855, %v863
    %v869 = vsel %vm864, %v857, %v849
    %v870 = vsel %vm864, %v859, %v851
    %v871 = vsel %vm864, %v861, %v853
    %v872 = vsel %vm864, %v863, %v855
    %873 = vset.pattern.permute.xlu0 8
    %874 = vperm.xlu0 %873, %v282
    %v875 = vpop.permute.xlu0 %874
    %877 = vset.pattern.permute.xlu0 8
    %878 = vperm.xlu0 %877, %v283
    %v879 = vpop.permute.xlu0 %878
    %881 = vset.pattern.permute.xlu0 8
    %882 = vperm.xlu0 %881, %v284
    %v883 = vpop.permute.xlu0 %882
    %885 = vset.pattern.permute.xlu0 8
    %886 = vperm.xlu0 %885, %v285
    %v887 = vpop.permute.xlu0 %886
    %v889 = vmul.f32 %v865, %v875
    %v890 = vmul.f32 %v869, %v875
    %v891 = vmul.f32 %v866, %v879
    %v892 = vmul.f32 %v870, %v879
    %v893 = vmul.f32 %v867, %v883
    %v894 = vmul.f32 %v871, %v883
    %v895 = vmul.f32 %v868, %v887
    %v896 = vmul.f32 %v872, %v887
    %v898 = vlaneseq
    %v899 = vshrl.u32 %v898, 7
    %v900 = vsub.s32 0, %v899
    %v901 = vrot.slane %v93, %v900
    %v902 = vlaneseq
    %v903 = vshrl.u32 %v902, 7
    %v904 = vsub.s32 1, %v903
    %v905 = vrot.slane %v93, %v904
    %v908 = vmul.f32 %v889, %v901
    %v909 = vmul.f32 %v890, %v905
    %v910 = vmul.f32 %v891, %v901
    %v911 = vmul.f32 %v892, %v905
    %v912 = vmul.f32 %v893, %v901
    %v913 = vmul.f32 %v894, %v905
    %v914 = vmul.f32 %v895, %v901
    %v915 = vmul.f32 %v896, %v905
    %v916 = vadd.f32 %v840, %v908
    %v917 = vadd.f32 %v841, %v909
    %v918 = vadd.f32 %v842, %v910
    %v919 = vadd.f32 %v843, %v911
    %v920 = vadd.f32 %v844, %v912
    %v921 = vadd.f32 %v845, %v913
    %v922 = vadd.f32 %v846, %v914
    %v923 = vadd.f32 %v847, %v915
    %v924 = vld [vmem:[%s5] sm:$0xff]
    %v925 = vld [vmem:[%s5 + $0x8] sm:$0xff]
    %v926 = vld [vmem:[%s5 + $0x10] sm:$0xff]
    %v927 = vld [vmem:[%s5 + $0x18] sm:$0xff]
    %929 = vset.pattern.permute.xlu0 0
    %930 = vperm.xlu0 %929, %v924
    %v931 = vpop.permute.xlu0 %930
    %934 = vset.pattern.permute.xlu0 0
    %935 = vperm.xlu0 %934, %v925
    %v936 = vpop.permute.xlu0 %935
    %939 = vset.pattern.permute.xlu0 0
    %940 = vperm.xlu0 %939, %v926
    %v941 = vpop.permute.xlu0 %940
    %944 = vset.pattern.permute.xlu0 0
    %945 = vperm.xlu0 %944, %v927
    %v946 = vpop.permute.xlu0 %945
    %v948 = vadd.f32 %v916, %v931
    %v949 = vadd.f32 %v917, %v931
    %v950 = vadd.f32 %v918, %v936
    %v951 = vadd.f32 %v919, %v936
    %v952 = vadd.f32 %v920, %v941
    %v953 = vadd.f32 %v921, %v941
    %v954 = vadd.f32 %v922, %v946
    %v955 = vadd.f32 %v923, %v946
    %v956 = vxor.u32 %v948, 2147483648
    %v957 = vxor.u32 %v949, 2147483648
    %v958 = vxor.u32 %v950, 2147483648
    %v959 = vxor.u32 %v951, 2147483648
    %v960 = vxor.u32 %v952, 2147483648
    %v961 = vxor.u32 %v953, 2147483648
    %v962 = vxor.u32 %v954, 2147483648
    %v963 = vxor.u32 %v955, 2147483648
    %v964 = vmul.f32 %v956, 1.442695
    %v965 = vpow.pop %v964
    %v966 = vmul.f32 %v957, 1.442695
    %v967 = vpow.pop %v966
    %v968 = vmul.f32 %v958, 1.442695
    %v969 = vpow.pop %v968
    %v970 = vmul.f32 %v959, 1.442695
    %v971 = vpow.pop %v970
    %v972 = vmul.f32 %v960, 1.442695
    %v973 = vpow.pop %v972
    %v974 = vmul.f32 %v961, 1.442695
    %v975 = vpow.pop %v974
    %v976 = vmul.f32 %v962, 1.442695
    %v977 = vpow.pop %v976
    %v978 = vmul.f32 %v963, 1.442695
    %v979 = vpow.pop %v978
    %v980 = vadd.f32 %v965, 1.0
    %v981 = vadd.f32 %v967, 1.0
    %v982 = vadd.f32 %v969, 1.0
    %v983 = vadd.f32 %v971, 1.0
    %v984 = vadd.f32 %v973, 1.0
    %v985 = vadd.f32 %v975, 1.0
    %v986 = vadd.f32 %v977, 1.0
    %v987 = vadd.f32 %v979, 1.0
    %v988 = vrcp.pop %v980
    %v989 = vmul.f32 1.0, %v988
    %v990 = vrcp.pop %v981
    %v991 = vmul.f32 1.0, %v990
    %v992 = vrcp.pop %v982
    %v993 = vmul.f32 1.0, %v992
    %v994 = vrcp.pop %v983
    %v995 = vmul.f32 1.0, %v994
    %v996 = vrcp.pop %v984
    %v997 = vmul.f32 1.0, %v996
    %v998 = vrcp.pop %v985
    %v999 = vmul.f32 1.0, %v998
    %v1000 = vrcp.pop %v986
    %v1001 = vmul.f32 1.0, %v1000
    %v1002 = vrcp.pop %v987
    %v1003 = vmul.f32 1.0, %v1002
    %v1004 = vmul.f32 %v948, %v989
    %v1005 = vmul.f32 %v949, %v991
    %v1006 = vmul.f32 %v950, %v993
    %v1007 = vmul.f32 %v951, %v995
    %v1008 = vmul.f32 %v952, %v997
    %v1009 = vmul.f32 %v953, %v999
    %v1010 = vmul.f32 %v954, %v1001
    %v1011 = vmul.f32 %v955, %v1003
    %v1012 = vadd.f32 %v1004, %v1005
    %1013 = vadd.xlane.f32.xlu0 %v1012
    %v1014 = vpop.xlane.xlu0 %1013
    %v1015 = vadd.f32 %v1006, %v1007
    %1016 = vadd.xlane.f32.xlu0 %v1015
    %v1017 = vpop.xlane.xlu0 %1016
    %v1018 = vadd.f32 %v1008, %v1009
    %1019 = vadd.xlane.f32.xlu0 %v1018
    %v1020 = vpop.xlane.xlu0 %1019
    %v1021 = vadd.f32 %v1010, %v1011
    %1022 = vadd.xlane.f32.xlu0 %v1021
    %v1023 = vpop.xlane.xlu0 %1022
    %v1024 = vmul.f32 %v1014, 0.00390625
    %v1025 = vmul.f32 %v1017, 0.00390625
    %v1026 = vmul.f32 %v1020, 0.00390625
    %v1027 = vmul.f32 %v1023, 0.00390625
    %v1028 = vld [vmem:[%s6] sm:$0xff]
    %v1029 = vld [vmem:[%s6 + $0x8] sm:$0xff]
    %v1030 = vld [vmem:[%s6 + $0x10] sm:$0xff]
    %v1031 = vld [vmem:[%s6 + $0x18] sm:$0xff]
    %v1032 = vmul.f32 %v1024, %v1028
    %v1033 = vmul.f32 %v1025, %v1029
    %v1034 = vmul.f32 %v1026, %v1030
    %v1035 = vmul.f32 %v1027, %v1031
    %vm1036 = vcmask 15360
    %v1037 = vsel %vm1036, %v1032, 0.0
    %v1038 = vsel %vm1036, %v1033, 0.0
    %v1039 = vadd.f32 %v1037, %v1038
    %v1040 = vsel %vm1036, %v1034, 0.0
    %v1041 = vadd.f32 %v1039, %v1040
    %v1042 = vsel %vm1036, %v1035, 0.0
    %v1043 = vadd.f32 %v1041, %v1042
    %v1044 = vrot.slane %v1043, 4
    %v1045 = vadd.f32 %v1043, %v1044
    %v1046 = vrot.slane %v1045, 2
    %v1047 = vadd.f32 %v1045, %v1046
    %v1048 = vrot.slane %v1047, 1
    %v1049 = vadd.f32 %v1047, %v1048
    %v1050 = vxor.u32 %v1049, 2147483648
    %v1051 = vmul.f32 %v1050, 1.442695
    %v1052 = vpow.pop %v1051
    %v1053 = vadd.f32 %v1052, 1.0
    %v1054 = vrcp.pop %v1053
    %v1055 = vmul.f32 1.0, %v1054
    %v1056 = vmul.f32 %v1049, %v1055
    %v1057 = vld [vmem:[%s7] sm:$0xff]
    %v1058 = vld [vmem:[%s7 + $0x8] sm:$0xff]
    %v1059 = vld [vmem:[%s7 + $0x10] sm:$0xff]
    %v1060 = vld [vmem:[%s7 + $0x18] sm:$0xff]
    %v1061 = vmul.f32 %v1057, %v1056
    %v1062 = vmul.f32 %v1058, %v1056
    %v1063 = vmul.f32 %v1059, %v1056
    %v1064 = vmul.f32 %v1060, %v1056
    %v1065 = vsel %vm1036, %v1061, 0.0
    %1066 = vadd.xlane.f32.xlu0 %v1065
    %v1067 = vpop.xlane.xlu0 %1066
    %v1068 = vsel %vm1036, %v1062, 0.0
    %1069 = vadd.xlane.f32.xlu0 %v1068
    %v1070 = vpop.xlane.xlu0 %1069
    %v1071 = vsel %vm1036, %v1063, 0.0
    %1072 = vadd.xlane.f32.xlu0 %v1071
    %v1073 = vpop.xlane.xlu0 %1072
    %v1074 = vsel %vm1036, %v1064, 0.0
    %1075 = vadd.xlane.f32.xlu0 %v1074
    %v1076 = vpop.xlane.xlu0 %1075
    %v1077 = vxor.u32 %v1067, 2147483648
    %v1078 = vxor.u32 %v1070, 2147483648
    %v1079 = vxor.u32 %v1073, 2147483648
    %v1080 = vxor.u32 %v1076, 2147483648
    %v1081 = vmul.f32 %v1077, 1.442695
    %v1082 = vpow.pop %v1081
    %v1083 = vmul.f32 %v1078, 1.442695
    %v1084 = vpow.pop %v1083
    %v1085 = vmul.f32 %v1079, 1.442695
    %v1086 = vpow.pop %v1085
    %v1087 = vmul.f32 %v1080, 1.442695
    %v1088 = vpow.pop %v1087
    %v1089 = vadd.f32 %v1082, 1.0
    %v1090 = vadd.f32 %v1084, 1.0
    %v1091 = vadd.f32 %v1086, 1.0
    %v1092 = vadd.f32 %v1088, 1.0
    %v1093 = vrcp.pop %v1089
    %v1094 = vmul.f32 1.0, %v1093
    %v1095 = vrcp.pop %v1090
    %v1096 = vmul.f32 1.0, %v1095
    %v1097 = vrcp.pop %v1091
    %v1098 = vmul.f32 1.0, %v1097
    %v1099 = vrcp.pop %v1092
    %v1100 = vmul.f32 1.0, %v1099
    %v1101 = vmul.f32 %v1004, %v1094
    %v1102 = vmul.f32 %v1005, %v1094
    %v1103 = vmul.f32 %v1006, %v1096
    %v1104 = vmul.f32 %v1007, %v1096
    %v1105 = vmul.f32 %v1008, %v1098
    %v1106 = vmul.f32 %v1009, %v1098
    %v1107 = vmul.f32 %v1010, %v1100
    %v1108 = vmul.f32 %v1011, %v1100
    %v1109 = vld [vmem:[%s8] sm:$0xff]
    %v1110 = vld [vmem:[%s9] sm:$0xff]
    %1112 = vset.pattern.permute.xlu0 0
    %1113 = vperm.xlu0 %1112, %v1110
    %v1114 = vpop.permute.xlu0 %1113
    %vm1116 = vcmask 261120
    %v1118 = vsel %vm1116, %v1109, 0
    %1120 = vmatprep.subr.mxu0 0.0
    %1121 = vmatpush1.msra.mxu0 0.0
    %1122 = vmatprep.subr.mxu0 0.0
    %1123 = vmatpush1.msra.mxu0 0.0
    %1124 = vmatprep.subr.mxu0 0.0
    %1125 = vmatpush1.msra.mxu0 0.0
    %1126 = vmatprep.subr.mxu0 0.0
    %1127 = vmatpush1.msra.mxu0 0.0
    %1128 = vmatprep.subr.mxu0 0.0
    %1129 = vmatpush1.msra.mxu0 0.0
    %1130 = vmatprep.subr.mxu0 0.0
    %1131 = vmatpush1.msra.mxu0 0.0
    %1132 = vmatprep.subr.mxu0 0.0
    %1133 = vmatpush1.msra.mxu0 0.0
    %1134 = vmatprep.subr.mxu0 0.0
    %1135 = vmatpush1.msra.mxu0 0.0
    %1136 = vmatprep.subr.mxu0 0.0
    %1137 = vmatpush1.msra.mxu0 0.0
    %1138 = vmatprep.subr.mxu0 0.0
    %1139 = vmatpush1.msra.mxu0 0.0
    %1140 = vmatprep.subr.mxu0 0.0
    %1141 = vmatpush1.msra.mxu0 0.0
    %1142 = vmatprep.subr.mxu0 0.0
    %1143 = vmatpush1.msra.mxu0 0.0
    %1144 = vmatprep.subr.mxu0 %v1108
    %1145 = vmatpush1.msra.mxu0 %v1107
    %1146 = vmatprep.subr.mxu0 %v1106
    %1147 = vmatpush1.msra.mxu0 %v1105
    %1148 = vmatprep.subr.mxu0 %v1104
    %1149 = vmatpush1.msra.mxu0 %v1103
    %1150 = vmatprep.subr.mxu0 %v1102
    %1151 = vmatpush1.msra.mxu0 %v1101
    %1152 = vmatprep.subr.mxu0 0.0
    %1153 = vmatpush2.msra.mxu0 0.0
    %1154 = vmatprep.subr.mxu0 0.0
    %1155 = vmatpush2.msra.mxu0 0.0
    %1156 = vmatprep.subr.mxu0 0.0
    %1157 = vmatpush2.msra.mxu0 0.0
    %1158 = vmatprep.subr.mxu0 0.0
    %1159 = vmatpush2.msra.mxu0 0.0
    %1160 = vmatprep.subr.mxu0 0.0
    %1161 = vmatpush2.msra.mxu0 0.0
    %1162 = vmatprep.subr.mxu0 0.0
    %1163 = vmatpush2.msra.mxu0 0.0
    %1164 = vmatprep.subr.mxu0 0.0
    %1165 = vmatpush2.msra.mxu0 0.0
    %1166 = vmatprep.subr.mxu0 0.0
    %1167 = vmatpush2.msra.mxu0 0.0
    %1168 = vmatprep.subr.mxu0 0.0
    %1169 = vmatpush2.msra.mxu0 0.0
    %1170 = vmatprep.subr.mxu0 0.0
    %1171 = vmatpush2.msra.mxu0 0.0
    %1172 = vmatprep.subr.mxu0 0.0
    %1173 = vmatpush2.msra.mxu0 0.0
    %1174 = vmatprep.subr.mxu0 0.0
    %1175 = vmatpush2.msra.mxu0 0.0
    %1176 = vmatprep.subr.mxu0 0.0
    %1177 = vmatpush2.msra.mxu0 0.0
    %1178 = vmatprep.subr.mxu0 0.0
    %1179 = vmatpush2.msra.mxu0 0.0
    %1180 = vmatprep.subr.mxu0 0.0
    %1181 = vmatpush2.msra.mxu0 0.0
    %1182 = vmatprep.subr.mxu0 0.0
    %1183 = vmatpush2.msra.mxu0 0.0
    %1184 = vmatprep.mubr.f32.mxu0 0.0
    %1185 = vmatmul.mubr.f32.gmra.mxu0 %v1118
    %v1186 = vpop.f32.mrf.mxu0
    %v1187 = vadd.f32 %v1114, %v1186
    %v1188 = vpop.f32.mrf.mxu0
    %v1189 = vadd.f32 %v1114, %v1188
    %1190 = vdwg.mxu0
    %v1191 = vadd.f32 %v1187, %v94
    %v1192 = vadd.f32 %v1189, %v95
    %1193 = vst [vmem:[#allocation2] sm:$0xff] %v1191
    %1194 = vst [vmem:[#allocation2 + $0x8] sm:$0xff] %v1192
    %s1195 = scalar_lea.vmem %s0, 16
    %v1196 = vld [vmem:[%s1195] sm:$0xff]
    %v1197 = vld [vmem:[%s1195 + $0x8] sm:$0xff]
    %v1198 = vld [vmem:[%s2] sm:$0xff]
    %v1199 = vld [vmem:[%s2 + $0x8] sm:$0xff]
    %v1200 = vld [vmem:[%s2 + $0x10] sm:$0xff]
    %v1201 = vld [vmem:[%s2 + $0x18] sm:$0xff]
    %v1202 = vld [vmem:[%s3] sm:$0xff]
    %v1203 = vld [vmem:[%s3 + $0x8] sm:$0xff]
    %v1204 = vld [vmem:[%s3 + $0x10] sm:$0xff]
    %v1205 = vld [vmem:[%s3 + $0x18] sm:$0xff]
    %1207 = vset.pattern.permute.xlu0 0
    %1208 = vperm.xlu0 %1207, %v1202
    %v1209 = vpop.permute.xlu0 %1208
    %1212 = vset.pattern.permute.xlu0 0
    %1213 = vperm.xlu0 %1212, %v1203
    %v1214 = vpop.permute.xlu0 %1213
    %1217 = vset.pattern.permute.xlu0 0
    %1218 = vperm.xlu0 %1217, %v1204
    %v1219 = vpop.permute.xlu0 %1218
    %1222 = vset.pattern.permute.xlu0 0
    %1223 = vperm.xlu0 %1222, %v1205
    %v1224 = vpop.permute.xlu0 %1223
    %v1227 = vsel %vm124, %v1198, 0
    %v1230 = vsel %vm124, %v1199, 0
    %v1233 = vsel %vm124, %v1200, 0
    %v1236 = vsel %vm124, %v1201, 0
    %1238 = vmatprep.subr.mxu0 0.0
    %1239 = vmatpush1.msra.mxu0 0.0
    %1240 = vmatprep.subr.mxu0 0.0
    %1241 = vmatpush1.msra.mxu0 0.0
    %1242 = vmatprep.subr.mxu0 0.0
    %1243 = vmatpush1.msra.mxu0 0.0
    %1244 = vmatprep.subr.mxu0 0.0
    %1245 = vmatpush1.msra.mxu0 0.0
    %1246 = vmatprep.subr.mxu0 0.0
    %1247 = vmatpush1.msra.mxu0 0.0
    %1248 = vmatprep.subr.mxu0 0.0
    %1249 = vmatpush1.msra.mxu0 0.0
    %1250 = vmatprep.subr.mxu0 0.0
    %1251 = vmatpush1.msra.mxu0 0.0
    %1252 = vmatprep.subr.mxu0 0.0
    %1253 = vmatpush1.msra.mxu0 0.0
    %1254 = vmatprep.subr.mxu0 0.0
    %1255 = vmatpush1.msra.mxu0 0.0
    %1256 = vmatprep.subr.mxu0 0.0
    %1257 = vmatpush1.msra.mxu0 0.0
    %1258 = vmatprep.subr.mxu0 0.0
    %1259 = vmatpush1.msra.mxu0 0.0
    %1260 = vmatprep.subr.mxu0 0.0
    %1261 = vmatpush1.msra.mxu0 0.0
    %1262 = vmatprep.subr.mxu0 0.0
    %1263 = vmatpush1.msra.mxu0 0.0
    %1264 = vmatprep.subr.mxu0 0.0
    %1265 = vmatpush1.msra.mxu0 0.0
    %1266 = vmatprep.subr.mxu0 0.0
    %1267 = vmatpush1.msra.mxu0 0.0
    %1268 = vmatprep.subr.mxu0 %v1197
    %1269 = vmatpush1.msra.mxu0 %v1196
    %1270 = vmatprep.subr.mxu0 0.0
    %1271 = vmatpush2.msra.mxu0 0.0
    %1272 = vmatprep.subr.mxu0 0.0
    %1273 = vmatpush2.msra.mxu0 0.0
    %1274 = vmatprep.subr.mxu0 0.0
    %1275 = vmatpush2.msra.mxu0 0.0
    %1276 = vmatprep.subr.mxu0 0.0
    %1277 = vmatpush2.msra.mxu0 0.0
    %1278 = vmatprep.subr.mxu0 0.0
    %1279 = vmatpush2.msra.mxu0 0.0
    %1280 = vmatprep.subr.mxu0 0.0
    %1281 = vmatpush2.msra.mxu0 0.0
    %1282 = vmatprep.subr.mxu0 0.0
    %1283 = vmatpush2.msra.mxu0 0.0
    %1284 = vmatprep.subr.mxu0 0.0
    %1285 = vmatpush2.msra.mxu0 0.0
    %1286 = vmatprep.subr.mxu0 0.0
    %1287 = vmatpush2.msra.mxu0 0.0
    %1288 = vmatprep.subr.mxu0 0.0
    %1289 = vmatpush2.msra.mxu0 0.0
    %1290 = vmatprep.subr.mxu0 0.0
    %1291 = vmatpush2.msra.mxu0 0.0
    %1292 = vmatprep.subr.mxu0 0.0
    %1293 = vmatpush2.msra.mxu0 0.0
    %1294 = vmatprep.subr.mxu0 0.0
    %1295 = vmatpush2.msra.mxu0 0.0
    %1296 = vmatprep.subr.mxu0 0.0
    %1297 = vmatpush2.msra.mxu0 0.0
    %1298 = vmatprep.subr.mxu0 0.0
    %1299 = vmatpush2.msra.mxu0 0.0
    %1300 = vmatprep.subr.mxu0 0.0
    %1301 = vmatpush2.msra.mxu0 0.0
    %1302 = vmatprep.mubr.f32.mxu0 0.0
    %1303 = vmatmul.mubr.f32.gmra.mxu0 %v1227
    %v1304 = vpop.f32.mrf.mxu0
    %v1305 = vadd.f32 %v1209, %v1304
    %v1306 = vpop.f32.mrf.mxu0
    %v1307 = vadd.f32 %v1209, %v1306
    %1308 = vmatprep.mubr.f32.mxu0 0.0
    %1309 = vmatmul.mubr.f32.gmra.mxu0 %v1230
    %v1310 = vpop.f32.mrf.mxu0
    %v1311 = vadd.f32 %v1214, %v1310
    %v1312 = vpop.f32.mrf.mxu0
    %v1313 = vadd.f32 %v1214, %v1312
    %1314 = vmatprep.mubr.f32.mxu0 0.0
    %1315 = vmatmul.mubr.f32.gmra.mxu0 %v1233
    %v1316 = vpop.f32.mrf.mxu0
    %v1317 = vadd.f32 %v1219, %v1316
    %v1318 = vpop.f32.mrf.mxu0
    %v1319 = vadd.f32 %v1219, %v1318
    %1320 = vmatprep.mubr.f32.mxu0 0.0
    %1321 = vmatmul.mubr.f32.gmra.mxu0 %v1236
    %v1322 = vpop.f32.mrf.mxu0
    %v1323 = vadd.f32 %v1224, %v1322
    %v1324 = vpop.f32.mrf.mxu0
    %v1325 = vadd.f32 %v1224, %v1324
    %1326 = vdwg.mxu0
    %v1327 = vxor.u32 %v1305, 2147483648
    %v1328 = vxor.u32 %v1307, 2147483648
    %v1329 = vxor.u32 %v1311, 2147483648
    %v1330 = vxor.u32 %v1313, 2147483648
    %v1331 = vxor.u32 %v1317, 2147483648
    %v1332 = vxor.u32 %v1319, 2147483648
    %v1333 = vxor.u32 %v1323, 2147483648
    %v1334 = vxor.u32 %v1325, 2147483648
    %v1335 = vmul.f32 %v1327, 1.442695
    %v1336 = vpow.pop %v1335
    %v1337 = vmul.f32 %v1328, 1.442695
    %v1338 = vpow.pop %v1337
    %v1339 = vmul.f32 %v1329, 1.442695
    %v1340 = vpow.pop %v1339
    %v1341 = vmul.f32 %v1330, 1.442695
    %v1342 = vpow.pop %v1341
    %v1343 = vmul.f32 %v1331, 1.442695
    %v1344 = vpow.pop %v1343
    %v1345 = vmul.f32 %v1332, 1.442695
    %v1346 = vpow.pop %v1345
    %v1347 = vmul.f32 %v1333, 1.442695
    %v1348 = vpow.pop %v1347
    %v1349 = vmul.f32 %v1334, 1.442695
    %v1350 = vpow.pop %v1349
    %v1351 = vadd.f32 %v1336, 1.0
    %v1352 = vadd.f32 %v1338, 1.0
    %v1353 = vadd.f32 %v1340, 1.0
    %v1354 = vadd.f32 %v1342, 1.0
    %v1355 = vadd.f32 %v1344, 1.0
    %v1356 = vadd.f32 %v1346, 1.0
    %v1357 = vadd.f32 %v1348, 1.0
    %v1358 = vadd.f32 %v1350, 1.0
    %v1359 = vrcp.pop %v1351
    %v1360 = vmul.f32 1.0, %v1359
    %v1361 = vrcp.pop %v1352
    %v1362 = vmul.f32 1.0, %v1361
    %v1363 = vrcp.pop %v1353
    %v1364 = vmul.f32 1.0, %v1363
    %v1365 = vrcp.pop %v1354
    %v1366 = vmul.f32 1.0, %v1365
    %v1367 = vrcp.pop %v1355
    %v1368 = vmul.f32 1.0, %v1367
    %v1369 = vrcp.pop %v1356
    %v1370 = vmul.f32 1.0, %v1369
    %v1371 = vrcp.pop %v1357
    %v1372 = vmul.f32 1.0, %v1371
    %v1373 = vrcp.pop %v1358
    %v1374 = vmul.f32 1.0, %v1373
    %v1375 = vmul.f32 %v1305, %v1360
    %v1376 = vmul.f32 %v1307, %v1362
    %v1377 = vmul.f32 %v1311, %v1364
    %v1378 = vmul.f32 %v1313, %v1366
    %v1379 = vmul.f32 %v1317, %v1368
    %v1380 = vmul.f32 %v1319, %v1370
    %v1381 = vmul.f32 %v1323, %v1372
    %v1382 = vmul.f32 %v1325, %v1374
    %v1383 = vld [vmem:[%s4] sm:$0xff]
    %v1384 = vld [vmem:[%s4 + $0x8] sm:$0xff]
    %v1385 = vld [vmem:[%s4 + $0x10] sm:$0xff]
    %v1386 = vld [vmem:[%s4 + $0x18] sm:$0xff]
    %1388 = vset.pattern.permute.xlu0 4
    %1389 = vperm.xlu0 %1388, %v1383
    %v1390 = vpop.permute.xlu0 %1389
    %1393 = vset.pattern.permute.xlu0 4
    %1394 = vperm.xlu0 %1393, %v1384
    %v1395 = vpop.permute.xlu0 %1394
    %1398 = vset.pattern.permute.xlu0 4
    %1399 = vperm.xlu0 %1398, %v1385
    %v1400 = vpop.permute.xlu0 %1399
    %1403 = vset.pattern.permute.xlu0 4
    %1404 = vperm.xlu0 %1403, %v1386
    %v1405 = vpop.permute.xlu0 %1404
    %v1407 = vmul.f32 %v1375, %v1390
    %v1408 = vmul.f32 %v1376, %v1390
    %v1409 = vmul.f32 %v1377, %v1395
    %v1410 = vmul.f32 %v1378, %v1395
    %v1411 = vmul.f32 %v1379, %v1400
    %v1412 = vmul.f32 %v1380, %v1400
    %v1413 = vmul.f32 %v1381, %v1405
    %v1414 = vmul.f32 %v1382, %v1405
    %1415 = vrot.lane.b32.xlu0 %v1375, 17
    %v1416 = vpop.permute.xlu0 %1415
    %1417 = vrot.lane.b32.xlu0 %v1377, 17
    %v1418 = vpop.permute.xlu0 %1417
    %1419 = vrot.lane.b32.xlu0 %v1379, 17
    %v1420 = vpop.permute.xlu0 %1419
    %1421 = vrot.lane.b32.xlu0 %v1381, 17
    %v1422 = vpop.permute.xlu0 %1421
    %1423 = vrot.lane.b32.xlu0 %v1376, 17
    %v1424 = vpop.permute.xlu0 %1423
    %1425 = vrot.lane.b32.xlu0 %v1378, 17
    %v1426 = vpop.permute.xlu0 %1425
    %1427 = vrot.lane.b32.xlu0 %v1380, 17
    %v1428 = vpop.permute.xlu0 %1427
    %1429 = vrot.lane.b32.xlu0 %v1382, 17
    %v1430 = vpop.permute.xlu0 %1429
    %v1431 = vsel %vm332, %v1416, %v1424
    %v1432 = vsel %vm332, %v1418, %v1426
    %v1433 = vsel %vm332, %v1420, %v1428
    %v1434 = vsel %vm332, %v1422, %v1430
    %v1435 = vsel %vm332, %v1424, %v1416
    %v1436 = vsel %vm332, %v1426, %v1418
    %v1437 = vsel %vm332, %v1428, %v1420
    %v1438 = vsel %vm332, %v1430, %v1422
    %1439 = vset.pattern.permute.xlu0 0
    %1440 = vperm.xlu0 %1439, %v1383
    %v1441 = vpop.permute.xlu0 %1440
    %1443 = vset.pattern.permute.xlu0 0
    %1444 = vperm.xlu0 %1443, %v1384
    %v1445 = vpop.permute.xlu0 %1444
    %1447 = vset.pattern.permute.xlu0 0
    %1448 = vperm.xlu0 %1447, %v1385
    %v1449 = vpop.permute.xlu0 %1448
    %1451 = vset.pattern.permute.xlu0 0
    %1452 = vperm.xlu0 %1451, %v1386
    %v1453 = vpop.permute.xlu0 %1452
    %v1455 = vmul.f32 %v1435, %v1441
    %v1456 = vmul.f32 %v1431, %v1441
    %v1457 = vmul.f32 %v1436, %v1445
    %v1458 = vmul.f32 %v1432, %v1445
    %v1459 = vmul.f32 %v1437, %v1449
    %v1460 = vmul.f32 %v1433, %v1449
    %v1461 = vmul.f32 %v1438, %v1453
    %v1462 = vmul.f32 %v1434, %v1453
    %v1463 = vmul.f32 %v1455, %v369
    %v1464 = vmul.f32 %v1456, %v373
    %v1465 = vmul.f32 %v1457, %v369
    %v1466 = vmul.f32 %v1458, %v373
    %v1467 = vmul.f32 %v1459, %v369
    %v1468 = vmul.f32 %v1460, %v373
    %v1469 = vmul.f32 %v1461, %v369
    %v1470 = vmul.f32 %v1462, %v373
    %v1471 = vadd.f32 %v1407, %v1463
    %v1472 = vadd.f32 %v1408, %v1464
    %v1473 = vadd.f32 %v1409, %v1465
    %v1474 = vadd.f32 %v1410, %v1466
    %v1475 = vadd.f32 %v1411, %v1467
    %v1476 = vadd.f32 %v1412, %v1468
    %v1477 = vadd.f32 %v1413, %v1469
    %v1478 = vadd.f32 %v1414, %v1470
    %1479 = vrot.lane.b32.xlu0 %v1375, 16
    %v1480 = vpop.permute.xlu0 %1479
    %1481 = vrot.lane.b32.xlu0 %v1377, 16
    %v1482 = vpop.permute.xlu0 %1481
    %1483 = vrot.lane.b32.xlu0 %v1379, 16
    %v1484 = vpop.permute.xlu0 %1483
    %1485 = vrot.lane.b32.xlu0 %v1381, 16
    %v1486 = vpop.permute.xlu0 %1485
    %1487 = vrot.lane.b32.xlu0 %v1376, 16
    %v1488 = vpop.permute.xlu0 %1487
    %1489 = vrot.lane.b32.xlu0 %v1378, 16
    %v1490 = vpop.permute.xlu0 %1489
    %1491 = vrot.lane.b32.xlu0 %v1380, 16
    %v1492 = vpop.permute.xlu0 %1491
    %1493 = vrot.lane.b32.xlu0 %v1382, 16
    %v1494 = vpop.permute.xlu0 %1493
    %v1495 = vsel %vm408, %v1480, %v1488
    %v1496 = vsel %vm408, %v1482, %v1490
    %v1497 = vsel %vm408, %v1484, %v1492
    %v1498 = vsel %vm408, %v1486, %v1494
    %v1499 = vsel %vm408, %v1488, %v1480
    %v1500 = vsel %vm408, %v1490, %v1482
    %v1501 = vsel %vm408, %v1492, %v1484
    %v1502 = vsel %vm408, %v1494, %v1486
    %1503 = vset.pattern.permute.xlu0 1
    %1504 = vperm.xlu0 %1503, %v1383
    %v1505 = vpop.permute.xlu0 %1504
    %1507 = vset.pattern.permute.xlu0 1
    %1508 = vperm.xlu0 %1507, %v1384
    %v1509 = vpop.permute.xlu0 %1508
    %1511 = vset.pattern.permute.xlu0 1
    %1512 = vperm.xlu0 %1511, %v1385
    %v1513 = vpop.permute.xlu0 %1512
    %1515 = vset.pattern.permute.xlu0 1
    %1516 = vperm.xlu0 %1515, %v1386
    %v1517 = vpop.permute.xlu0 %1516
    %v1519 = vmul.f32 %v1499, %v1505
    %v1520 = vmul.f32 %v1495, %v1505
    %v1521 = vmul.f32 %v1500, %v1509
    %v1522 = vmul.f32 %v1496, %v1509
    %v1523 = vmul.f32 %v1501, %v1513
    %v1524 = vmul.f32 %v1497, %v1513
    %v1525 = vmul.f32 %v1502, %v1517
    %v1526 = vmul.f32 %v1498, %v1517
    %v1527 = vmul.f32 %v1519, %v445
    %v1528 = vmul.f32 %v1520, %v449
    %v1529 = vmul.f32 %v1521, %v445
    %v1530 = vmul.f32 %v1522, %v449
    %v1531 = vmul.f32 %v1523, %v445
    %v1532 = vmul.f32 %v1524, %v449
    %v1533 = vmul.f32 %v1525, %v445
    %v1534 = vmul.f32 %v1526, %v449
    %v1535 = vadd.f32 %v1471, %v1527
    %v1536 = vadd.f32 %v1472, %v1528
    %v1537 = vadd.f32 %v1473, %v1529
    %v1538 = vadd.f32 %v1474, %v1530
    %v1539 = vadd.f32 %v1475, %v1531
    %v1540 = vadd.f32 %v1476, %v1532
    %v1541 = vadd.f32 %v1477, %v1533
    %v1542 = vadd.f32 %v1478, %v1534
    %1543 = vrot.lane.b32.xlu0 %v1375, 15
    %v1544 = vpop.permute.xlu0 %1543
    %1545 = vrot.lane.b32.xlu0 %v1377, 15
    %v1546 = vpop.permute.xlu0 %1545
    %1547 = vrot.lane.b32.xlu0 %v1379, 15
    %v1548 = vpop.permute.xlu0 %1547
    %1549 = vrot.lane.b32.xlu0 %v1381, 15
    %v1550 = vpop.permute.xlu0 %1549
    %1551 = vrot.lane.b32.xlu0 %v1376, 15
    %v1552 = vpop.permute.xlu0 %1551
    %1553 = vrot.lane.b32.xlu0 %v1378, 15
    %v1554 = vpop.permute.xlu0 %1553
    %1555 = vrot.lane.b32.xlu0 %v1380, 15
    %v1556 = vpop.permute.xlu0 %1555
    %1557 = vrot.lane.b32.xlu0 %v1382, 15
    %v1558 = vpop.permute.xlu0 %1557
    %v1559 = vsel %vm484, %v1544, %v1552
    %v1560 = vsel %vm484, %v1546, %v1554
    %v1561 = vsel %vm484, %v1548, %v1556
    %v1562 = vsel %vm484, %v1550, %v1558
    %v1563 = vsel %vm484, %v1552, %v1544
    %v1564 = vsel %vm484, %v1554, %v1546
    %v1565 = vsel %vm484, %v1556, %v1548
    %v1566 = vsel %vm484, %v1558, %v1550
    %1567 = vset.pattern.permute.xlu0 2
    %1568 = vperm.xlu0 %1567, %v1383
    %v1569 = vpop.permute.xlu0 %1568
    %1571 = vset.pattern.permute.xlu0 2
    %1572 = vperm.xlu0 %1571, %v1384
    %v1573 = vpop.permute.xlu0 %1572
    %1575 = vset.pattern.permute.xlu0 2
    %1576 = vperm.xlu0 %1575, %v1385
    %v1577 = vpop.permute.xlu0 %1576
    %1579 = vset.pattern.permute.xlu0 2
    %1580 = vperm.xlu0 %1579, %v1386
    %v1581 = vpop.permute.xlu0 %1580
    %v1583 = vmul.f32 %v1563, %v1569
    %v1584 = vmul.f32 %v1559, %v1569
    %v1585 = vmul.f32 %v1564, %v1573
    %v1586 = vmul.f32 %v1560, %v1573
    %v1587 = vmul.f32 %v1565, %v1577
    %v1588 = vmul.f32 %v1561, %v1577
    %v1589 = vmul.f32 %v1566, %v1581
    %v1590 = vmul.f32 %v1562, %v1581
    %v1591 = vmul.f32 %v1583, %v521
    %v1592 = vmul.f32 %v1584, %v525
    %v1593 = vmul.f32 %v1585, %v521
    %v1594 = vmul.f32 %v1586, %v525
    %v1595 = vmul.f32 %v1587, %v521
    %v1596 = vmul.f32 %v1588, %v525
    %v1597 = vmul.f32 %v1589, %v521
    %v1598 = vmul.f32 %v1590, %v525
    %v1599 = vadd.f32 %v1535, %v1591
    %v1600 = vadd.f32 %v1536, %v1592
    %v1601 = vadd.f32 %v1537, %v1593
    %v1602 = vadd.f32 %v1538, %v1594
    %v1603 = vadd.f32 %v1539, %v1595
    %v1604 = vadd.f32 %v1540, %v1596
    %v1605 = vadd.f32 %v1541, %v1597
    %v1606 = vadd.f32 %v1542, %v1598
    %1607 = vrot.lane.b32.xlu0 %v1375, 1
    %v1608 = vpop.permute.xlu0 %1607
    %1609 = vrot.lane.b32.xlu0 %v1377, 1
    %v1610 = vpop.permute.xlu0 %1609
    %1611 = vrot.lane.b32.xlu0 %v1379, 1
    %v1612 = vpop.permute.xlu0 %1611
    %1613 = vrot.lane.b32.xlu0 %v1381, 1
    %v1614 = vpop.permute.xlu0 %1613
    %1615 = vrot.lane.b32.xlu0 %v1376, 1
    %v1616 = vpop.permute.xlu0 %1615
    %1617 = vrot.lane.b32.xlu0 %v1378, 1
    %v1618 = vpop.permute.xlu0 %1617
    %1619 = vrot.lane.b32.xlu0 %v1380, 1
    %v1620 = vpop.permute.xlu0 %1619
    %1621 = vrot.lane.b32.xlu0 %v1382, 1
    %v1622 = vpop.permute.xlu0 %1621
    %v1623 = vsel %vm560, %v1608, %v1616
    %v1624 = vsel %vm560, %v1610, %v1618
    %v1625 = vsel %vm560, %v1612, %v1620
    %v1626 = vsel %vm560, %v1614, %v1622
    %v1627 = vsel %vm560, %v1616, %v1608
    %v1628 = vsel %vm560, %v1618, %v1610
    %v1629 = vsel %vm560, %v1620, %v1612
    %v1630 = vsel %vm560, %v1622, %v1614
    %1631 = vset.pattern.permute.xlu0 3
    %1632 = vperm.xlu0 %1631, %v1383
    %v1633 = vpop.permute.xlu0 %1632
    %1635 = vset.pattern.permute.xlu0 3
    %1636 = vperm.xlu0 %1635, %v1384
    %v1637 = vpop.permute.xlu0 %1636
    %1639 = vset.pattern.permute.xlu0 3
    %1640 = vperm.xlu0 %1639, %v1385
    %v1641 = vpop.permute.xlu0 %1640
    %1643 = vset.pattern.permute.xlu0 3
    %1644 = vperm.xlu0 %1643, %v1386
    %v1645 = vpop.permute.xlu0 %1644
    %v1647 = vmul.f32 %v1627, %v1633
    %v1648 = vmul.f32 %v1623, %v1633
    %v1649 = vmul.f32 %v1628, %v1637
    %v1650 = vmul.f32 %v1624, %v1637
    %v1651 = vmul.f32 %v1629, %v1641
    %v1652 = vmul.f32 %v1625, %v1641
    %v1653 = vmul.f32 %v1630, %v1645
    %v1654 = vmul.f32 %v1626, %v1645
    %v1655 = vmul.f32 %v1647, %v597
    %v1656 = vmul.f32 %v1648, %v601
    %v1657 = vmul.f32 %v1649, %v597
    %v1658 = vmul.f32 %v1650, %v601
    %v1659 = vmul.f32 %v1651, %v597
    %v1660 = vmul.f32 %v1652, %v601
    %v1661 = vmul.f32 %v1653, %v597
    %v1662 = vmul.f32 %v1654, %v601
    %v1663 = vadd.f32 %v1599, %v1655
    %v1664 = vadd.f32 %v1600, %v1656
    %v1665 = vadd.f32 %v1601, %v1657
    %v1666 = vadd.f32 %v1602, %v1658
    %v1667 = vadd.f32 %v1603, %v1659
    %v1668 = vadd.f32 %v1604, %v1660
    %v1669 = vadd.f32 %v1605, %v1661
    %v1670 = vadd.f32 %v1606, %v1662
    %1671 = vrot.lane.b32.xlu0 %v1375, 127
    %v1672 = vpop.permute.xlu0 %1671
    %1673 = vrot.lane.b32.xlu0 %v1377, 127
    %v1674 = vpop.permute.xlu0 %1673
    %1675 = vrot.lane.b32.xlu0 %v1379, 127
    %v1676 = vpop.permute.xlu0 %1675
    %1677 = vrot.lane.b32.xlu0 %v1381, 127
    %v1678 = vpop.permute.xlu0 %1677
    %1679 = vrot.lane.b32.xlu0 %v1376, 127
    %v1680 = vpop.permute.xlu0 %1679
    %1681 = vrot.lane.b32.xlu0 %v1378, 127
    %v1682 = vpop.permute.xlu0 %1681
    %1683 = vrot.lane.b32.xlu0 %v1380, 127
    %v1684 = vpop.permute.xlu0 %1683
    %1685 = vrot.lane.b32.xlu0 %v1382, 127
    %v1686 = vpop.permute.xlu0 %1685
    %v1687 = vsel %vm636, %v1672, %v1680
    %v1688 = vsel %vm636, %v1674, %v1682
    %v1689 = vsel %vm636, %v1676, %v1684
    %v1690 = vsel %vm636, %v1678, %v1686
    %v1691 = vsel %vm636, %v1680, %v1672
    %v1692 = vsel %vm636, %v1682, %v1674
    %v1693 = vsel %vm636, %v1684, %v1676
    %v1694 = vsel %vm636, %v1686, %v1678
    %1695 = vset.pattern.permute.xlu0 5
    %1696 = vperm.xlu0 %1695, %v1383
    %v1697 = vpop.permute.xlu0 %1696
    %1699 = vset.pattern.permute.xlu0 5
    %1700 = vperm.xlu0 %1699, %v1384
    %v1701 = vpop.permute.xlu0 %1700
    %1703 = vset.pattern.permute.xlu0 5
    %1704 = vperm.xlu0 %1703, %v1385
    %v1705 = vpop.permute.xlu0 %1704
    %1707 = vset.pattern.permute.xlu0 5
    %1708 = vperm.xlu0 %1707, %v1386
    %v1709 = vpop.permute.xlu0 %1708
    %v1711 = vmul.f32 %v1687, %v1697
    %v1712 = vmul.f32 %v1691, %v1697
    %v1713 = vmul.f32 %v1688, %v1701
    %v1714 = vmul.f32 %v1692, %v1701
    %v1715 = vmul.f32 %v1689, %v1705
    %v1716 = vmul.f32 %v1693, %v1705
    %v1717 = vmul.f32 %v1690, %v1709
    %v1718 = vmul.f32 %v1694, %v1709
    %v1719 = vmul.f32 %v1711, %v673
    %v1720 = vmul.f32 %v1712, %v677
    %v1721 = vmul.f32 %v1713, %v673
    %v1722 = vmul.f32 %v1714, %v677
    %v1723 = vmul.f32 %v1715, %v673
    %v1724 = vmul.f32 %v1716, %v677
    %v1725 = vmul.f32 %v1717, %v673
    %v1726 = vmul.f32 %v1718, %v677
    %v1727 = vadd.f32 %v1663, %v1719
    %v1728 = vadd.f32 %v1664, %v1720
    %v1729 = vadd.f32 %v1665, %v1721
    %v1730 = vadd.f32 %v1666, %v1722
    %v1731 = vadd.f32 %v1667, %v1723
    %v1732 = vadd.f32 %v1668, %v1724
    %v1733 = vadd.f32 %v1669, %v1725
    %v1734 = vadd.f32 %v1670, %v1726
    %1735 = vrot.lane.b32.xlu0 %v1375, 113
    %v1736 = vpop.permute.xlu0 %1735
    %1737 = vrot.lane.b32.xlu0 %v1377, 113
    %v1738 = vpop.permute.xlu0 %1737
    %1739 = vrot.lane.b32.xlu0 %v1379, 113
    %v1740 = vpop.permute.xlu0 %1739
    %1741 = vrot.lane.b32.xlu0 %v1381, 113
    %v1742 = vpop.permute.xlu0 %1741
    %1743 = vrot.lane.b32.xlu0 %v1376, 113
    %v1744 = vpop.permute.xlu0 %1743
    %1745 = vrot.lane.b32.xlu0 %v1378, 113
    %v1746 = vpop.permute.xlu0 %1745
    %1747 = vrot.lane.b32.xlu0 %v1380, 113
    %v1748 = vpop.permute.xlu0 %1747
    %1749 = vrot.lane.b32.xlu0 %v1382, 113
    %v1750 = vpop.permute.xlu0 %1749
    %v1751 = vsel %vm712, %v1736, %v1744
    %v1752 = vsel %vm712, %v1738, %v1746
    %v1753 = vsel %vm712, %v1740, %v1748
    %v1754 = vsel %vm712, %v1742, %v1750
    %v1755 = vsel %vm712, %v1744, %v1736
    %v1756 = vsel %vm712, %v1746, %v1738
    %v1757 = vsel %vm712, %v1748, %v1740
    %v1758 = vsel %vm712, %v1750, %v1742
    %1759 = vset.pattern.permute.xlu0 6
    %1760 = vperm.xlu0 %1759, %v1383
    %v1761 = vpop.permute.xlu0 %1760
    %1763 = vset.pattern.permute.xlu0 6
    %1764 = vperm.xlu0 %1763, %v1384
    %v1765 = vpop.permute.xlu0 %1764
    %1767 = vset.pattern.permute.xlu0 6
    %1768 = vperm.xlu0 %1767, %v1385
    %v1769 = vpop.permute.xlu0 %1768
    %1771 = vset.pattern.permute.xlu0 6
    %1772 = vperm.xlu0 %1771, %v1386
    %v1773 = vpop.permute.xlu0 %1772
    %v1775 = vmul.f32 %v1751, %v1761
    %v1776 = vmul.f32 %v1755, %v1761
    %v1777 = vmul.f32 %v1752, %v1765
    %v1778 = vmul.f32 %v1756, %v1765
    %v1779 = vmul.f32 %v1753, %v1769
    %v1780 = vmul.f32 %v1757, %v1769
    %v1781 = vmul.f32 %v1754, %v1773
    %v1782 = vmul.f32 %v1758, %v1773
    %v1783 = vmul.f32 %v1775, %v749
    %v1784 = vmul.f32 %v1776, %v753
    %v1785 = vmul.f32 %v1777, %v749
    %v1786 = vmul.f32 %v1778, %v753
    %v1787 = vmul.f32 %v1779, %v749
    %v1788 = vmul.f32 %v1780, %v753
    %v1789 = vmul.f32 %v1781, %v749
    %v1790 = vmul.f32 %v1782, %v753
    %v1791 = vadd.f32 %v1727, %v1783
    %v1792 = vadd.f32 %v1728, %v1784
    %v1793 = vadd.f32 %v1729, %v1785
    %v1794 = vadd.f32 %v1730, %v1786
    %v1795 = vadd.f32 %v1731, %v1787
    %v1796 = vadd.f32 %v1732, %v1788
    %v1797 = vadd.f32 %v1733, %v1789
    %v1798 = vadd.f32 %v1734, %v1790
    %1799 = vrot.lane.b32.xlu0 %v1375, 112
    %v1800 = vpop.permute.xlu0 %1799
    %1801 = vrot.lane.b32.xlu0 %v1377, 112
    %v1802 = vpop.permute.xlu0 %1801
    %1803 = vrot.lane.b32.xlu0 %v1379, 112
    %v1804 = vpop.permute.xlu0 %1803
    %1805 = vrot.lane.b32.xlu0 %v1381, 112
    %v1806 = vpop.permute.xlu0 %1805
    %1807 = vrot.lane.b32.xlu0 %v1376, 112
    %v1808 = vpop.permute.xlu0 %1807
    %1809 = vrot.lane.b32.xlu0 %v1378, 112
    %v1810 = vpop.permute.xlu0 %1809
    %1811 = vrot.lane.b32.xlu0 %v1380, 112
    %v1812 = vpop.permute.xlu0 %1811
    %1813 = vrot.lane.b32.xlu0 %v1382, 112
    %v1814 = vpop.permute.xlu0 %1813
    %v1815 = vsel %vm788, %v1800, %v1808
    %v1816 = vsel %vm788, %v1802, %v1810
    %v1817 = vsel %vm788, %v1804, %v1812
    %v1818 = vsel %vm788, %v1806, %v1814
    %v1819 = vsel %vm788, %v1808, %v1800
    %v1820 = vsel %vm788, %v1810, %v1802
    %v1821 = vsel %vm788, %v1812, %v1804
    %v1822 = vsel %vm788, %v1814, %v1806
    %1823 = vset.pattern.permute.xlu0 7
    %1824 = vperm.xlu0 %1823, %v1383
    %v1825 = vpop.permute.xlu0 %1824
    %1827 = vset.pattern.permute.xlu0 7
    %1828 = vperm.xlu0 %1827, %v1384
    %v1829 = vpop.permute.xlu0 %1828
    %1831 = vset.pattern.permute.xlu0 7
    %1832 = vperm.xlu0 %1831, %v1385
    %v1833 = vpop.permute.xlu0 %1832
    %1835 = vset.pattern.permute.xlu0 7
    %1836 = vperm.xlu0 %1835, %v1386
    %v1837 = vpop.permute.xlu0 %1836
    %v1839 = vmul.f32 %v1815, %v1825
    %v1840 = vmul.f32 %v1819, %v1825
    %v1841 = vmul.f32 %v1816, %v1829
    %v1842 = vmul.f32 %v1820, %v1829
    %v1843 = vmul.f32 %v1817, %v1833
    %v1844 = vmul.f32 %v1821, %v1833
    %v1845 = vmul.f32 %v1818, %v1837
    %v1846 = vmul.f32 %v1822, %v1837
    %v1847 = vmul.f32 %v1839, %v825
    %v1848 = vmul.f32 %v1840, %v829
    %v1849 = vmul.f32 %v1841, %v825
    %v1850 = vmul.f32 %v1842, %v829
    %v1851 = vmul.f32 %v1843, %v825
    %v1852 = vmul.f32 %v1844, %v829
    %v1853 = vmul.f32 %v1845, %v825
    %v1854 = vmul.f32 %v1846, %v829
    %v1855 = vadd.f32 %v1791, %v1847
    %v1856 = vadd.f32 %v1792, %v1848
    %v1857 = vadd.f32 %v1793, %v1849
    %v1858 = vadd.f32 %v1794, %v1850
    %v1859 = vadd.f32 %v1795, %v1851
    %v1860 = vadd.f32 %v1796, %v1852
    %v1861 = vadd.f32 %v1797, %v1853
    %v1862 = vadd.f32 %v1798, %v1854
    %1863 = vrot.lane.b32.xlu0 %v1375, 111
    %v1864 = vpop.permute.xlu0 %1863
    %1865 = vrot.lane.b32.xlu0 %v1377, 111
    %v1866 = vpop.permute.xlu0 %1865
    %1867 = vrot.lane.b32.xlu0 %v1379, 111
    %v1868 = vpop.permute.xlu0 %1867
    %1869 = vrot.lane.b32.xlu0 %v1381, 111
    %v1870 = vpop.permute.xlu0 %1869
    %1871 = vrot.lane.b32.xlu0 %v1376, 111
    %v1872 = vpop.permute.xlu0 %1871
    %1873 = vrot.lane.b32.xlu0 %v1378, 111
    %v1874 = vpop.permute.xlu0 %1873
    %1875 = vrot.lane.b32.xlu0 %v1380, 111
    %v1876 = vpop.permute.xlu0 %1875
    %1877 = vrot.lane.b32.xlu0 %v1382, 111
    %v1878 = vpop.permute.xlu0 %1877
    %v1879 = vsel %vm864, %v1864, %v1872
    %v1880 = vsel %vm864, %v1866, %v1874
    %v1881 = vsel %vm864, %v1868, %v1876
    %v1882 = vsel %vm864, %v1870, %v1878
    %v1883 = vsel %vm864, %v1872, %v1864
    %v1884 = vsel %vm864, %v1874, %v1866
    %v1885 = vsel %vm864, %v1876, %v1868
    %v1886 = vsel %vm864, %v1878, %v1870
    %1887 = vset.pattern.permute.xlu0 8
    %1888 = vperm.xlu0 %1887, %v1383
    %v1889 = vpop.permute.xlu0 %1888
    %1891 = vset.pattern.permute.xlu0 8
    %1892 = vperm.xlu0 %1891, %v1384
    %v1893 = vpop.permute.xlu0 %1892
    %1895 = vset.pattern.permute.xlu0 8
    %1896 = vperm.xlu0 %1895, %v1385
    %v1897 = vpop.permute.xlu0 %1896
    %1899 = vset.pattern.permute.xlu0 8
    %1900 = vperm.xlu0 %1899, %v1386
    %v1901 = vpop.permute.xlu0 %1900
    %v1903 = vmul.f32 %v1879, %v1889
    %v1904 = vmul.f32 %v1883, %v1889
    %v1905 = vmul.f32 %v1880, %v1893
    %v1906 = vmul.f32 %v1884, %v1893
    %v1907 = vmul.f32 %v1881, %v1897
    %v1908 = vmul.f32 %v1885, %v1897
    %v1909 = vmul.f32 %v1882, %v1901
    %v1910 = vmul.f32 %v1886, %v1901
    %v1911 = vmul.f32 %v1903, %v901
    %v1912 = vmul.f32 %v1904, %v905
    %v1913 = vmul.f32 %v1905, %v901
    %v1914 = vmul.f32 %v1906, %v905
    %v1915 = vmul.f32 %v1907, %v901
    %v1916 = vmul.f32 %v1908, %v905
    %v1917 = vmul.f32 %v1909, %v901
    %v1918 = vmul.f32 %v1910, %v905
    %v1919 = vadd.f32 %v1855, %v1911
    %v1920 = vadd.f32 %v1856, %v1912
    %v1921 = vadd.f32 %v1857, %v1913
    %v1922 = vadd.f32 %v1858, %v1914
    %v1923 = vadd.f32 %v1859, %v1915
    %v1924 = vadd.f32 %v1860, %v1916
    %v1925 = vadd.f32 %v1861, %v1917
    %v1926 = vadd.f32 %v1862, %v1918
    %v1927 = vld [vmem:[%s5] sm:$0xff]
    %v1928 = vld [vmem:[%s5 + $0x8] sm:$0xff]
    %v1929 = vld [vmem:[%s5 + $0x10] sm:$0xff]
    %v1930 = vld [vmem:[%s5 + $0x18] sm:$0xff]
    %1932 = vset.pattern.permute.xlu0 0
    %1933 = vperm.xlu0 %1932, %v1927
    %v1934 = vpop.permute.xlu0 %1933
    %1937 = vset.pattern.permute.xlu0 0
    %1938 = vperm.xlu0 %1937, %v1928
    %v1939 = vpop.permute.xlu0 %1938
    %1942 = vset.pattern.permute.xlu0 0
    %1943 = vperm.xlu0 %1942, %v1929
    %v1944 = vpop.permute.xlu0 %1943
    %1947 = vset.pattern.permute.xlu0 0
    %1948 = vperm.xlu0 %1947, %v1930
    %v1949 = vpop.permute.xlu0 %1948
    %v1951 = vadd.f32 %v1919, %v1934
    %v1952 = vadd.f32 %v1920, %v1934
    %v1953 = vadd.f32 %v1921, %v1939
    %v1954 = vadd.f32 %v1922, %v1939
    %v1955 = vadd.f32 %v1923, %v1944
    %v1956 = vadd.f32 %v1924, %v1944
    %v1957 = vadd.f32 %v1925, %v1949
    %v1958 = vadd.f32 %v1926, %v1949
    %v1959 = vxor.u32 %v1951, 2147483648
    %v1960 = vxor.u32 %v1952, 2147483648
    %v1961 = vxor.u32 %v1953, 2147483648
    %v1962 = vxor.u32 %v1954, 2147483648
    %v1963 = vxor.u32 %v1955, 2147483648
    %v1964 = vxor.u32 %v1956, 2147483648
    %v1965 = vxor.u32 %v1957, 2147483648
    %v1966 = vxor.u32 %v1958, 2147483648
    %v1967 = vmul.f32 %v1959, 1.442695
    %v1968 = vpow.pop %v1967
    %v1969 = vmul.f32 %v1960, 1.442695
    %v1970 = vpow.pop %v1969
    %v1971 = vmul.f32 %v1961, 1.442695
    %v1972 = vpow.pop %v1971
    %v1973 = vmul.f32 %v1962, 1.442695
    %v1974 = vpow.pop %v1973
    %v1975 = vmul.f32 %v1963, 1.442695
    %v1976 = vpow.pop %v1975
    %v1977 = vmul.f32 %v1964, 1.442695
    %v1978 = vpow.pop %v1977
    %v1979 = vmul.f32 %v1965, 1.442695
    %v1980 = vpow.pop %v1979
    %v1981 = vmul.f32 %v1966, 1.442695
    %v1982 = vpow.pop %v1981
    %v1983 = vadd.f32 %v1968, 1.0
    %v1984 = vadd.f32 %v1970, 1.0
    %v1985 = vadd.f32 %v1972, 1.0
    %v1986 = vadd.f32 %v1974, 1.0
    %v1987 = vadd.f32 %v1976, 1.0
    %v1988 = vadd.f32 %v1978, 1.0
    %v1989 = vadd.f32 %v1980, 1.0
    %v1990 = vadd.f32 %v1982, 1.0
    %v1991 = vrcp.pop %v1983
    %v1992 = vmul.f32 1.0, %v1991
    %v1993 = vrcp.pop %v1984
    %v1994 = vmul.f32 1.0, %v1993
    %v1995 = vrcp.pop %v1985
    %v1996 = vmul.f32 1.0, %v1995
    %v1997 = vrcp.pop %v1986
    %v1998 = vmul.f32 1.0, %v1997
    %v1999 = vrcp.pop %v1987
    %v2000 = vmul.f32 1.0, %v1999
    %v2001 = vrcp.pop %v1988
    %v2002 = vmul.f32 1.0, %v2001
    %v2003 = vrcp.pop %v1989
    %v2004 = vmul.f32 1.0, %v2003
    %v2005 = vrcp.pop %v1990
    %v2006 = vmul.f32 1.0, %v2005
    %v2007 = vmul.f32 %v1951, %v1992
    %v2008 = vmul.f32 %v1952, %v1994
    %v2009 = vmul.f32 %v1953, %v1996
    %v2010 = vmul.f32 %v1954, %v1998
    %v2011 = vmul.f32 %v1955, %v2000
    %v2012 = vmul.f32 %v1956, %v2002
    %v2013 = vmul.f32 %v1957, %v2004
    %v2014 = vmul.f32 %v1958, %v2006
    %v2015 = vadd.f32 %v2007, %v2008
    %2016 = vadd.xlane.f32.xlu0 %v2015
    %v2017 = vpop.xlane.xlu0 %2016
    %v2018 = vadd.f32 %v2009, %v2010
    %2019 = vadd.xlane.f32.xlu0 %v2018
    %v2020 = vpop.xlane.xlu0 %2019
    %v2021 = vadd.f32 %v2011, %v2012
    %2022 = vadd.xlane.f32.xlu0 %v2021
    %v2023 = vpop.xlane.xlu0 %2022
    %v2024 = vadd.f32 %v2013, %v2014
    %2025 = vadd.xlane.f32.xlu0 %v2024
    %v2026 = vpop.xlane.xlu0 %2025
    %v2027 = vmul.f32 %v2017, 0.00390625
    %v2028 = vmul.f32 %v2020, 0.00390625
    %v2029 = vmul.f32 %v2023, 0.00390625
    %v2030 = vmul.f32 %v2026, 0.00390625
    %v2031 = vld [vmem:[%s6] sm:$0xff]
    %v2032 = vld [vmem:[%s6 + $0x8] sm:$0xff]
    %v2033 = vld [vmem:[%s6 + $0x10] sm:$0xff]
    %v2034 = vld [vmem:[%s6 + $0x18] sm:$0xff]
    %v2035 = vmul.f32 %v2027, %v2031
    %v2036 = vmul.f32 %v2028, %v2032
    %v2037 = vmul.f32 %v2029, %v2033
    %v2038 = vmul.f32 %v2030, %v2034
    %v2039 = vsel %vm1036, %v2035, 0.0
    %v2040 = vsel %vm1036, %v2036, 0.0
    %v2041 = vadd.f32 %v2039, %v2040
    %v2042 = vsel %vm1036, %v2037, 0.0
    %v2043 = vadd.f32 %v2041, %v2042
    %v2044 = vsel %vm1036, %v2038, 0.0
    %v2045 = vadd.f32 %v2043, %v2044
    %v2046 = vrot.slane %v2045, 4
    %v2047 = vadd.f32 %v2045, %v2046
    %v2048 = vrot.slane %v2047, 2
    %v2049 = vadd.f32 %v2047, %v2048
    %v2050 = vrot.slane %v2049, 1
    %v2051 = vadd.f32 %v2049, %v2050
    %v2052 = vxor.u32 %v2051, 2147483648
    %v2053 = vmul.f32 %v2052, 1.442695
    %v2054 = vpow.pop %v2053
    %v2055 = vadd.f32 %v2054, 1.0
    %v2056 = vrcp.pop %v2055
    %v2057 = vmul.f32 1.0, %v2056
    %v2058 = vmul.f32 %v2051, %v2057
    %v2059 = vld [vmem:[%s7] sm:$0xff]
    %v2060 = vld [vmem:[%s7 + $0x8] sm:$0xff]
    %v2061 = vld [vmem:[%s7 + $0x10] sm:$0xff]
    %v2062 = vld [vmem:[%s7 + $0x18] sm:$0xff]
    %v2063 = vmul.f32 %v2059, %v2058
    %v2064 = vmul.f32 %v2060, %v2058
    %v2065 = vmul.f32 %v2061, %v2058
    %v2066 = vmul.f32 %v2062, %v2058
    %v2067 = vsel %vm1036, %v2063, 0.0
    %2068 = vadd.xlane.f32.xlu0 %v2067
    %v2069 = vpop.xlane.xlu0 %2068
    %v2070 = vsel %vm1036, %v2064, 0.0
    %2071 = vadd.xlane.f32.xlu0 %v2070
    %v2072 = vpop.xlane.xlu0 %2071
    %v2073 = vsel %vm1036, %v2065, 0.0
    %2074 = vadd.xlane.f32.xlu0 %v2073
    %v2075 = vpop.xlane.xlu0 %2074
    %v2076 = vsel %vm1036, %v2066, 0.0
    %2077 = vadd.xlane.f32.xlu0 %v2076
    %v2078 = vpop.xlane.xlu0 %2077
    %v2079 = vxor.u32 %v2069, 2147483648
    %v2080 = vxor.u32 %v2072, 2147483648
    %v2081 = vxor.u32 %v2075, 2147483648
    %v2082 = vxor.u32 %v2078, 2147483648
    %v2083 = vmul.f32 %v2079, 1.442695
    %v2084 = vpow.pop %v2083
    %v2085 = vmul.f32 %v2080, 1.442695
    %v2086 = vpow.pop %v2085
    %v2087 = vmul.f32 %v2081, 1.442695
    %v2088 = vpow.pop %v2087
    %v2089 = vmul.f32 %v2082, 1.442695
    %v2090 = vpow.pop %v2089
    %v2091 = vadd.f32 %v2084, 1.0
    %v2092 = vadd.f32 %v2086, 1.0
    %v2093 = vadd.f32 %v2088, 1.0
    %v2094 = vadd.f32 %v2090, 1.0
    %v2095 = vrcp.pop %v2091
    %v2096 = vmul.f32 1.0, %v2095
    %v2097 = vrcp.pop %v2092
    %v2098 = vmul.f32 1.0, %v2097
    %v2099 = vrcp.pop %v2093
    %v2100 = vmul.f32 1.0, %v2099
    %v2101 = vrcp.pop %v2094
    %v2102 = vmul.f32 1.0, %v2101
    %v2103 = vmul.f32 %v2007, %v2096
    %v2104 = vmul.f32 %v2008, %v2096
    %v2105 = vmul.f32 %v2009, %v2098
    %v2106 = vmul.f32 %v2010, %v2098
    %v2107 = vmul.f32 %v2011, %v2100
    %v2108 = vmul.f32 %v2012, %v2100
    %v2109 = vmul.f32 %v2013, %v2102
    %v2110 = vmul.f32 %v2014, %v2102
    %v2111 = vld [vmem:[%s8] sm:$0xff]
    %v2112 = vld [vmem:[%s9] sm:$0xff]
    %2114 = vset.pattern.permute.xlu0 0
    %2115 = vperm.xlu0 %2114, %v2112
    %v2116 = vpop.permute.xlu0 %2115
    %v2119 = vsel %vm1116, %v2111, 0
    %2121 = vmatprep.subr.mxu0 0.0
    %2122 = vmatpush1.msra.mxu0 0.0
    %2123 = vmatprep.subr.mxu0 0.0
    %2124 = vmatpush1.msra.mxu0 0.0
    %2125 = vmatprep.subr.mxu0 0.0
    %2126 = vmatpush1.msra.mxu0 0.0
    %2127 = vmatprep.subr.mxu0 0.0
    %2128 = vmatpush1.msra.mxu0 0.0
    %2129 = vmatprep.subr.mxu0 0.0
    %2130 = vmatpush1.msra.mxu0 0.0
    %2131 = vmatprep.subr.mxu0 0.0
    %2132 = vmatpush1.msra.mxu0 0.0
    %2133 = vmatprep.subr.mxu0 0.0
    %2134 = vmatpush1.msra.mxu0 0.0
    %2135 = vmatprep.subr.mxu0 0.0
    %2136 = vmatpush1.msra.mxu0 0.0
    %2137 = vmatprep.subr.mxu0 0.0
    %2138 = vmatpush1.msra.mxu0 0.0
    %2139 = vmatprep.subr.mxu0 0.0
    %2140 = vmatpush1.msra.mxu0 0.0
    %2141 = vmatprep.subr.mxu0 0.0
    %2142 = vmatpush1.msra.mxu0 0.0
    %2143 = vmatprep.subr.mxu0 0.0
    %2144 = vmatpush1.msra.mxu0 0.0
    %2145 = vmatprep.subr.mxu0 %v2110
    %2146 = vmatpush1.msra.mxu0 %v2109
    %2147 = vmatprep.subr.mxu0 %v2108
    %2148 = vmatpush1.msra.mxu0 %v2107
    %2149 = vmatprep.subr.mxu0 %v2106
    %2150 = vmatpush1.msra.mxu0 %v2105
    %2151 = vmatprep.subr.mxu0 %v2104
    %2152 = vmatpush1.msra.mxu0 %v2103
    %2153 = vmatprep.subr.mxu0 0.0
    %2154 = vmatpush2.msra.mxu0 0.0
    %2155 = vmatprep.subr.mxu0 0.0
    %2156 = vmatpush2.msra.mxu0 0.0
    %2157 = vmatprep.subr.mxu0 0.0
    %2158 = vmatpush2.msra.mxu0 0.0
    %2159 = vmatprep.subr.mxu0 0.0
    %2160 = vmatpush2.msra.mxu0 0.0
    %2161 = vmatprep.subr.mxu0 0.0
    %2162 = vmatpush2.msra.mxu0 0.0
    %2163 = vmatprep.subr.mxu0 0.0
    %2164 = vmatpush2.msra.mxu0 0.0
    %2165 = vmatprep.subr.mxu0 0.0
    %2166 = vmatpush2.msra.mxu0 0.0
    %2167 = vmatprep.subr.mxu0 0.0
    %2168 = vmatpush2.msra.mxu0 0.0
    %2169 = vmatprep.subr.mxu0 0.0
    %2170 = vmatpush2.msra.mxu0 0.0
    %2171 = vmatprep.subr.mxu0 0.0
    %2172 = vmatpush2.msra.mxu0 0.0
    %2173 = vmatprep.subr.mxu0 0.0
    %2174 = vmatpush2.msra.mxu0 0.0
    %2175 = vmatprep.subr.mxu0 0.0
    %2176 = vmatpush2.msra.mxu0 0.0
    %2177 = vmatprep.subr.mxu0 0.0
    %2178 = vmatpush2.msra.mxu0 0.0
    %2179 = vmatprep.subr.mxu0 0.0
    %2180 = vmatpush2.msra.mxu0 0.0
    %2181 = vmatprep.subr.mxu0 0.0
    %2182 = vmatpush2.msra.mxu0 0.0
    %2183 = vmatprep.subr.mxu0 0.0
    %2184 = vmatpush2.msra.mxu0 0.0
    %2185 = vmatprep.mubr.f32.mxu0 0.0
    %2186 = vmatmul.mubr.f32.gmra.mxu0 %v2119
    %v2187 = vpop.f32.mrf.mxu0
    %v2188 = vadd.f32 %v2116, %v2187
    %v2189 = vpop.f32.mrf.mxu0
    %v2190 = vadd.f32 %v2116, %v2189
    %2191 = vdwg.mxu0
    %v2192 = vadd.f32 %v2188, %v1196
    %v2193 = vadd.f32 %v2190, %v1197
    %s2194 = scalar_lea.vmem [#allocation2], 16
    %2195 = vst [vmem:[%s2194] sm:$0xff] %v2192
    %2196 = vst [vmem:[%s2194 + $0x8] sm:$0xff] %v2193
    // Predicated region
    $region42: #{tpu_custom_call.1} parent=1 // pred_check
      _
    $region43: #{tpu_custom_call.1} parent=1 // pred_check_branch
      %2198 = sbr.rel (0) target = $region45
    $region44: #{tpu_custom_call.1} parent=1 // pred_region
      %s2200 = ssub.s32 512, 512
      %2201 = vsyncadd [#allocation3], %s2200
      %s2202 = sshll.u32 [#allocation2], 4
      %s2203 = int_to_ptr.vmem [resolvable:$true] %s2202
      %2208 = dma.vmem_to_hbm [thread:$0]  %s2203, 512, %s10, [#allocation3], 256, 256, 16
    $region45: #{tpu_custom_call.1} parent=1 // pred_fallthru
      _
    // Predicated region
    $region46: #{tpu_custom_call.1} parent=1 // pred_check
      _
    $region47: #{tpu_custom_call.1} parent=1 // pred_check_branch
      %2210 = sbr.rel (0) target = $region49
    $region48: #{tpu_custom_call.1} parent=1 // pred_region
      %2211 = dma.done [#allocation3], 512
    $region49: #{tpu_custom_call.1} parent=1 // pred_fallthru
      _
    %2212 = vsyncpa [#allocation3], 1

</llo_original>
